<compile_context>
chip_gen: v7x
topology: tpu7x:2x2x1
jax: 0.10.0
libtpu: 0.0.40
codegen_flags: <defaults>
</compile_context>

<pallas_src>
import functools

import jax
import jax.numpy as jnp
import numpy as np
from jax.experimental import pallas as pl
from jax.experimental.pallas import tpu as pltpu


def down_kernel(x_ref, w1_ref, s1_ref, b1_ref, w2_ref, s2_ref, b2_ref, o_ref,
                *, num_row_blocks, lane_dense):
    # x_ref : (1, Rb+4, 2, Wp, 2*Cin) bf16 -- one row-block slab, 2x2 pool
    #         window interleaved, 2 pooled halo rows above and below.
    # w*_ref: (3, 3*Ci, Co)           bf16 -- dy-major, K ordered (dx, ci)
    # s*/b* : (1, Co)                 f32  -- folded conv-bias + BN (eval)
    # o_ref : (1, Rb*Wp, Co) f32   or (1, Rb, Wp*Co) f32 when lane_dense
    Rb4, _, Wp, Cin2 = x_ref.shape[1:]
    Cin = Cin2 // 2
    Rb = Rb4 - 4
    Cout = w1_ref.shape[2]
    NR = num_row_blocks
    r = pl.program_id(0) % NR            # row-block index within the image

    # ---- MaxPool2d(2), fused: max over H phases then W phases (bf16, exact) --
    a = jnp.maximum(x_ref[0, :, 0], x_ref[0, :, 1])            # (Rb+4, Wp, 2*Cin)
    pooled = jnp.maximum(a[..., :Cin], a[..., Cin:])           # (Rb+4, Wp, Cin)
    pooled = pooled.astype(jnp.float32)   # plane building / reshapes stay f32

    def conv3x3_bn_relu(src, w_ref, s_ref, b_ref, rows_out):
        """3x3 conv as 3 matmuls with K=3*Ci, + folded BN + ReLU.

        src: (rows_out+2, Wp, Ci) f32 -- rows include a 1-row halo each side.
        Returns (rows_out*Wp, Co) f32.
        """
        Rsrc, _, Ci = src.shape
        Co = w_ref.shape[2]
        # W zero padding + the 3 dx-shifted copies, built once per conv.
        zcol = jnp.zeros((Rsrc, 1, Ci), src.dtype)
        padw = jnp.concatenate([zcol, src, zcol], axis=1)           # (Rsrc, Wp+2, Ci)
        lhs3 = jnp.concatenate(
            [padw[:, 0:Wp], padw[:, 1:Wp + 1], padw[:, 2:Wp + 2]],
            axis=2)                                                 # (Rsrc, Wp, 3*Ci)
        acc = jnp.zeros((rows_out * Wp, Co), jnp.float32)
        for dy in range(3):                     # static; dy slice of dim 0 is free
            lhs = lhs3[dy:dy + rows_out].reshape(rows_out * Wp, 3 * Ci)
            acc = acc + jnp.dot(lhs.astype(jnp.bfloat16), w_ref[dy],
                                preferred_element_type=jnp.float32)
        return jnp.maximum(acc * s_ref[...] + b_ref[...], 0.0)

    # conv1 over the Rb+4 pooled rows -> Rb+2 rows (block output + 1-row halo).
    y1 = conv3x3_bn_relu(pooled, w1_ref, s1_ref, b1_ref, Rb + 2)
    y1 = y1.reshape(Rb + 2, Wp, Cout)

    # conv2's zero padding at the image top/bottom: the halo rows that fall
    # outside the image must be exactly 0 (not conv1 applied to zero input).
    row = jax.lax.broadcasted_iota(jnp.int32, (Rb + 2, Wp, Cout), 0)
    halo = ((row == 0) & (r == 0)) | ((row == Rb + 1) & (r == NR - 1))
    y1 = jnp.where(halo, 0.0, y1)

    # conv2 over the Rb+2 rows -> exactly the Rb output rows of this block.
    y2 = conv3x3_bn_relu(y1, w2_ref, s2_ref, b2_ref, Rb)        # (Rb*Wp, Cout)

    if lane_dense:
        o_ref[0] = y2.reshape(Rb, Wp * Cout)     # lane-dense (unmasked) store
    else:
        o_ref[0] = y2                            # standard (Rb*Wp, Cout) store


def down_forward(x_nchw, w1_hwio, s1, b1, w2_hwio, s2, b2, *, row_block=32):
    """x_nchw: (N, Cin, H, W) f32.  Returns (N, Cout, H//2, W//2) f32."""
    N, Cin, H, W = x_nchw.shape
    assert H % 2 == 0 and W % 2 == 0, "MaxPool2d(2): even H and W required here"
    Hp, Wp = H // 2, W // 2
    Cout = w1_hwio.shape[-1]
    # Keeps the in-kernel f32 (rows, Wp, C) <-> (rows*Wp, C) reshapes layout-exact.
    assert Wp % 8 == 0, "pooled width must be a multiple of 8 (W % 16 == 0)"

    # Row-block size: largest divisor of Hp that is <= row_block.  Keeps the
    # per-step VMEM footprint bounded (v7x: 64 MiB physical VMEM) while giving
    # the auto-pipeliner multiple steps to overlap DMA with compute.
    Rb = max(d for d in range(1, min(row_block, Hp) + 1) if Hp % d == 0)
    NR = Hp // Rb

    # NCHW -> NHWC + bf16 (halves input HBM traffic; pooling commutes with the
    # round-to-nearest cast so results are unchanged).
    x = jnp.transpose(x_nchw, (0, 2, 3, 1)).astype(jnp.bfloat16)   # (N, H, W, Cin)

    # Build non-overlapping row-block slabs that already contain the 2-pooled-row
    # halo (zero rows at the image border double as conv1's zero padding).
    xpad = jnp.pad(x, ((0, 0), (4, 4), (0, 0), (0, 0)))            # (N, H+8, W, Cin)
    slabs = jnp.stack(
        [xpad[:, 2 * r * Rb: 2 * r * Rb + 2 * Rb + 8] for r in range(NR)], axis=1)
    # FREE reshape that interleaves the 2x2 pool window: (..., Rb+4, 2, Wp, 2*Cin)
    slabs = slabs.reshape(N * NR, Rb + 4, 2, Wp, 2 * Cin)

    # Weights HWIO -> (3, 3*Ci, Co): dy-major, K ordered (dx, ci); bf16 in HBM.
    w1 = w1_hwio.reshape(3, 3 * Cin, Cout).astype(jnp.bfloat16)
    w2 = w2_hwio.reshape(3, 3 * Cout, Cout).astype(jnp.bfloat16)

    # Lane-dense output when Cout < 128 lanes would otherwise force masked
    # stores; only enabled when the merged lane dim is 128-aligned (the default
    # (Rb*Wp, Cout) layout is used otherwise, incl. the small demo shape).
    lane_dense = (Cout % 128 != 0) and ((Wp * Cout) % 128 == 0)
    if lane_dense:
        out_shape = jax.ShapeDtypeStruct((N * NR, Rb, Wp * Cout), jnp.float32)
        out_spec = pl.BlockSpec((1, Rb, Wp * Cout), lambda i: (i, 0, 0))
    else:
        out_shape = jax.ShapeDtypeStruct((N * NR, Rb * Wp, Cout), jnp.float32)
        out_spec = pl.BlockSpec((1, Rb * Wp, Cout), lambda i: (i, 0, 0))

    vec_spec = pl.BlockSpec((1, Cout), lambda i: (0, 0))
    kernel = functools.partial(down_kernel, num_row_blocks=NR,
                               lane_dense=lane_dense)

    out = pl.pallas_call(
        kernel,
        out_shape=out_shape,
        grid=(N * NR,),                       # every step fully independent
        in_specs=[
            pl.BlockSpec((1, Rb + 4, 2, Wp, 2 * Cin),
                         lambda i: (i, 0, 0, 0, 0)),
            pl.BlockSpec((3, 3 * Cin, Cout), lambda i: (0, 0, 0)),
            vec_spec, vec_spec,
            pl.BlockSpec((3, 3 * Cout, Cout), lambda i: (0, 0, 0)),
            vec_spec, vec_spec,
        ],
        out_specs=out_spec,
        compiler_params=pltpu.CompilerParams(
            dimension_semantics=("parallel",),
            vmem_limit_bytes=48 * 1024 * 1024),   # headroom under v7x's 64 MiB
    )(slabs, w1, s1, b1, w2, s2, b2)

    out = out.reshape(N, Hp, Wp, Cout)
    return jnp.transpose(out, (0, 3, 1, 2))


def fold_bn(conv_bias, gamma, beta, mean, var, eps=1e-5):
    scale = gamma / jnp.sqrt(var + eps)
    bias = (conv_bias - mean) * scale + beta
    return scale.reshape(1, -1), bias.reshape(1, -1)


def reference(x_nchw, w1, s1, b1, w2, s2, b2):
    """Pure-JAX reference (XLA conv, same bf16-operand / f32-accum policy)."""
    x = jnp.transpose(x_nchw, (0, 2, 3, 1))
    p = jnp.maximum(jnp.maximum(x[:, 0::2, 0::2], x[:, 0::2, 1::2]),
                    jnp.maximum(x[:, 1::2, 0::2], x[:, 1::2, 1::2]))

    def conv(inp, w, s, b):
        y = jax.lax.conv_general_dilated(
            inp.astype(jnp.bfloat16), w.astype(jnp.bfloat16),
            (1, 1), ((1, 1), (1, 1)),
            dimension_numbers=('NHWC', 'HWIO', 'NHWC'),
            preferred_element_type=jnp.float32)
        return jnp.maximum(y * s + b, 0.0)

    h = conv(p, w1, s1, b1)
    h = conv(h, w2, s2, b2)
    return jnp.transpose(h, (0, 3, 1, 2))


if __name__ == "__main__":
    N, Cin, H, W = 2, 4, 16, 16
    Cout = 8

    key = jax.random.PRNGKey(0)
    keys = jax.random.split(key, 13)

    x = jax.random.normal(keys[0], (N, Cin, H, W), jnp.float32)

    # --- deterministic parameter init (PyTorch shapes: OIHW conv weights) ---
    w1_oihw = 0.1 * jax.random.normal(keys[1], (Cout, Cin, 3, 3), jnp.float32)
    cb1 = 0.1 * jax.random.normal(keys[2], (Cout,), jnp.float32)
    g1 = 1.0 + 0.1 * jax.random.normal(keys[3], (Cout,), jnp.float32)
    be1 = 0.1 * jax.random.normal(keys[4], (Cout,), jnp.float32)
    mu1 = 0.1 * jax.random.normal(keys[5], (Cout,), jnp.float32)
    var1 = 0.5 + jnp.abs(jax.random.normal(keys[6], (Cout,), jnp.float32))

    w2_oihw = 0.1 * jax.random.normal(keys[7], (Cout, Cout, 3, 3), jnp.float32)
    cb2 = 0.1 * jax.random.normal(keys[8], (Cout,), jnp.float32)
    g2 = 1.0 + 0.1 * jax.random.normal(keys[9], (Cout,), jnp.float32)
    be2 = 0.1 * jax.random.normal(keys[10], (Cout,), jnp.float32)
    mu2 = 0.1 * jax.random.normal(keys[11], (Cout,), jnp.float32)
    var2 = 0.5 + jnp.abs(jax.random.normal(keys[12], (Cout,), jnp.float32))

    # OIHW -> HWIO; cast ONCE to bf16 so kernel and reference use identical weights.
    w1_hwio = jnp.transpose(w1_oihw, (2, 3, 1, 0)).astype(jnp.bfloat16)
    w2_hwio = jnp.transpose(w2_oihw, (2, 3, 1, 0)).astype(jnp.bfloat16)
    s1, b1 = fold_bn(cb1, g1, be1, mu1, var1)
    s2, b2 = fold_bn(cb2, g2, be2, mu2, var2)

    out = down_forward(x, w1_hwio, s1, b1, w2_hwio, s2, b2)
    out = jax.block_until_ready(out)

    ref = jax.block_until_ready(reference(x, w1_hwio, s1, b1, w2_hwio, s2, b2))
    np.testing.assert_allclose(np.asarray(out), np.asarray(ref), atol=1e-2, rtol=1e-2)

    assert out.shape == (N, Cout, H // 2, W // 2)
    print("KERNEL_OK")
</pallas_src>

<mosaic_0001>
module attributes {stable_mosaic.version = 11 : i64} {
  func.func @down_kernel(%arg0: i32, %arg1: memref<1x12x2x8x8xbf16, #tpu.memory_space<vmem>>, %arg2: memref<3x12x8xbf16, #tpu.memory_space<vmem>>, %arg3: memref<1x8xf32, #tpu.memory_space<vmem>>, %arg4: memref<1x8xf32, #tpu.memory_space<vmem>>, %arg5: memref<3x24x8xbf16, #tpu.memory_space<vmem>>, %arg6: memref<1x8xf32, #tpu.memory_space<vmem>>, %arg7: memref<1x8xf32, #tpu.memory_space<vmem>>, %arg8: memref<1x64x8xf32, #tpu.memory_space<vmem>>) attributes {dimension_semantics = [#tpu.dimension_semantics<parallel>], iteration_bounds = array<i64: 2>, scalar_prefetch = 0 : i64, scratch_operands = 0 : i64, tpu.core_type = #tpu.core_type<tc>, window_params = [{transform_indices = @transform_0, window_bounds = array<i64: 1, 12, 2, 8, 8>}, {pipeline_mode = #tpu.pipeline_mode<synchronous>, transform_indices = @transform_1, window_bounds = array<i64: 3, 12, 8>}, {pipeline_mode = #tpu.pipeline_mode<synchronous>, transform_indices = @transform_2, window_bounds = array<i64: 1, 8>}, {pipeline_mode = #tpu.pipeline_mode<synchronous>, transform_indices = @transform_3, window_bounds = array<i64: 1, 8>}, {pipeline_mode = #tpu.pipeline_mode<synchronous>, transform_indices = @transform_4, window_bounds = array<i64: 3, 24, 8>}, {pipeline_mode = #tpu.pipeline_mode<synchronous>, transform_indices = @transform_5, window_bounds = array<i64: 1, 8>}, {pipeline_mode = #tpu.pipeline_mode<synchronous>, transform_indices = @transform_6, window_bounds = array<i64: 1, 8>}, {transform_indices = @transform_7, window_bounds = array<i64: 1, 64, 8>}]} {
    %c1_i32 = arith.constant 1 : i32
    %c0_i32 = arith.constant 0 : i32
    %0 = arith.cmpi eq, %c1_i32, %c0_i32 : i32
    %c1_i32_0 = arith.constant 1 : i32
    %1 = arith.select %0, %c1_i32_0, %c1_i32 : i32
    %2 = arith.remsi %arg0, %1 : i32
    %c0_i32_1 = arith.constant 0 : i32
    %3 = arith.cmpi ne, %2, %c0_i32_1 : i32
    %c0_i32_2 = arith.constant 0 : i32
    %4 = arith.cmpi slt, %2, %c0_i32_2 : i32
    %c0_i32_3 = arith.constant 0 : i32
    %5 = arith.cmpi slt, %1, %c0_i32_3 : i32
    %6 = arith.xori %4, %5 : i1
    %7 = arith.andi %6, %3 : i1
    %8 = arith.addi %2, %1 : i32
    %9 = arith.select %7, %8, %2 : i32
    %c0 = arith.constant 0 : index
    %c0_4 = arith.constant 0 : index
    %c0_5 = arith.constant 0 : index
    %c0_6 = arith.constant 0 : index
    %c0_7 = arith.constant 0 : index
    %10 = vector.load %arg1[%c0, %c0_4, %c0_5, %c0_6, %c0_7] : memref<1x12x2x8x8xbf16, #tpu.memory_space<vmem>>, vector<1x12x1x8x8xbf16>
    %11 = vector.shape_cast %10 : vector<1x12x1x8x8xbf16> to vector<12x8x8xbf16>
    %c0_8 = arith.constant 0 : index
    %c0_9 = arith.constant 0 : index
    %c1 = arith.constant 1 : index
    %c0_10 = arith.constant 0 : index
    %c0_11 = arith.constant 0 : index
    %12 = vector.load %arg1[%c0_8, %c0_9, %c1, %c0_10, %c0_11] : memref<1x12x2x8x8xbf16, #tpu.memory_space<vmem>>, vector<1x12x1x8x8xbf16>
    %13 = vector.shape_cast %12 : vector<1x12x1x8x8xbf16> to vector<12x8x8xbf16>
    %14 = arith.maximumf %11, %13 : vector<12x8x8xbf16>
    %15 = vector.extract_strided_slice %14 {offsets = [0, 0, 0], sizes = [12, 8, 4], strides = [1, 1, 1]} : vector<12x8x8xbf16> to vector<12x8x4xbf16>
    %16 = vector.extract_strided_slice %14 {offsets = [0, 0, 4], sizes = [12, 8, 4], strides = [1, 1, 1]} : vector<12x8x8xbf16> to vector<12x8x4xbf16>
    %17 = arith.maximumf %15, %16 : vector<12x8x4xbf16>
    %18 = arith.extf %17 : vector<12x8x4xbf16> to vector<12x8x4xf32>
    %cst = arith.constant 0.000000e+00 : f32
    %19 = vector.broadcast %cst : f32 to vector<12x1x4xf32>
    %20 = tpu.concatenate %19, %18, %19 in 1 : vector<12x1x4xf32>, vector<12x8x4xf32>, vector<12x1x4xf32> -> vector<12x10x4xf32>
    %21 = vector.extract_strided_slice %20 {offsets = [0, 0, 0], sizes = [12, 8, 4], strides = [1, 1, 1]} : vector<12x10x4xf32> to vector<12x8x4xf32>
    %22 = vector.extract_strided_slice %20 {offsets = [0, 1, 0], sizes = [12, 8, 4], strides = [1, 1, 1]} : vector<12x10x4xf32> to vector<12x8x4xf32>
    %23 = vector.extract_strided_slice %20 {offsets = [0, 2, 0], sizes = [12, 8, 4], strides = [1, 1, 1]} : vector<12x10x4xf32> to vector<12x8x4xf32>
    %24 = tpu.concatenate %21, %22, %23 in 2 : vector<12x8x4xf32>, vector<12x8x4xf32>, vector<12x8x4xf32> -> vector<12x8x12xf32>
    %cst_12 = arith.constant 0.000000e+00 : f32
    %25 = vector.broadcast %cst_12 : f32 to vector<80x8xf32>
    %26 = vector.extract_strided_slice %24 {offsets = [0, 0, 0], sizes = [10, 8, 12], strides = [1, 1, 1]} : vector<12x8x12xf32> to vector<10x8x12xf32>
    %27 = vector.shape_cast %26 : vector<10x8x12xf32> to vector<80x12xf32>
    %28 = arith.truncf %27 : vector<80x12xf32> to vector<80x12xbf16>
    %c0_13 = arith.constant 0 : index
    %c0_14 = arith.constant 0 : index
    %c0_15 = arith.constant 0 : index
    %29 = vector.load %arg2[%c0_13, %c0_14, %c0_15] : memref<3x12x8xbf16, #tpu.memory_space<vmem>>, vector<1x12x8xbf16>
    %30 = vector.shape_cast %29 : vector<1x12x8xbf16> to vector<12x8xbf16>
    %cst_16 = arith.constant dense<0.000000e+00> : vector<80x8xf32>
    %31 = tpu.matmul %28, %30, %cst_16 {dimension_numbers = #tpu.dot_dimension_numbers<[1], [0], [0], [1], [0, 0, 1, 1], [], []>} : vector<80x12xbf16>, vector<12x8xbf16>, vector<80x8xf32> -> vector<80x8xf32>
    %32 = arith.addf %25, %31 : vector<80x8xf32>
    %33 = vector.extract_strided_slice %24 {offsets = [1, 0, 0], sizes = [10, 8, 12], strides = [1, 1, 1]} : vector<12x8x12xf32> to vector<10x8x12xf32>
    %34 = vector.shape_cast %33 : vector<10x8x12xf32> to vector<80x12xf32>
    %35 = arith.truncf %34 : vector<80x12xf32> to vector<80x12xbf16>
    %c1_17 = arith.constant 1 : index
    %c0_18 = arith.constant 0 : index
    %c0_19 = arith.constant 0 : index
    %36 = vector.load %arg2[%c1_17, %c0_18, %c0_19] : memref<3x12x8xbf16, #tpu.memory_space<vmem>>, vector<1x12x8xbf16>
    %37 = vector.shape_cast %36 : vector<1x12x8xbf16> to vector<12x8xbf16>
    %cst_20 = arith.constant dense<0.000000e+00> : vector<80x8xf32>
    %38 = tpu.matmul %35, %37, %cst_20 {dimension_numbers = #tpu.dot_dimension_numbers<[1], [0], [0], [1], [0, 0, 1, 1], [], []>} : vector<80x12xbf16>, vector<12x8xbf16>, vector<80x8xf32> -> vector<80x8xf32>
    %39 = arith.addf %32, %38 : vector<80x8xf32>
    %40 = vector.extract_strided_slice %24 {offsets = [2, 0, 0], sizes = [10, 8, 12], strides = [1, 1, 1]} : vector<12x8x12xf32> to vector<10x8x12xf32>
    %41 = vector.shape_cast %40 : vector<10x8x12xf32> to vector<80x12xf32>
    %42 = arith.truncf %41 : vector<80x12xf32> to vector<80x12xbf16>
    %c2 = arith.constant 2 : index
    %c0_21 = arith.constant 0 : index
    %c0_22 = arith.constant 0 : index
    %43 = vector.load %arg2[%c2, %c0_21, %c0_22] : memref<3x12x8xbf16, #tpu.memory_space<vmem>>, vector<1x12x8xbf16>
    %44 = vector.shape_cast %43 : vector<1x12x8xbf16> to vector<12x8xbf16>
    %cst_23 = arith.constant dense<0.000000e+00> : vector<80x8xf32>
    %45 = tpu.matmul %42, %44, %cst_23 {dimension_numbers = #tpu.dot_dimension_numbers<[1], [0], [0], [1], [0, 0, 1, 1], [], []>} : vector<80x12xbf16>, vector<12x8xbf16>, vector<80x8xf32> -> vector<80x8xf32>
    %46 = arith.addf %39, %45 : vector<80x8xf32>
    %c0_24 = arith.constant 0 : index
    %c0_25 = arith.constant 0 : index
    %47 = vector.load %arg3[%c0_24, %c0_25] : memref<1x8xf32, #tpu.memory_space<vmem>>, vector<1x8xf32>
    %48 = vector.broadcast %47 : vector<1x8xf32> to vector<80x8xf32>
    %49 = arith.mulf %46, %48 : vector<80x8xf32>
    %c0_26 = arith.constant 0 : index
    %c0_27 = arith.constant 0 : index
    %50 = vector.load %arg4[%c0_26, %c0_27] : memref<1x8xf32, #tpu.memory_space<vmem>>, vector<1x8xf32>
    %51 = vector.broadcast %50 : vector<1x8xf32> to vector<80x8xf32>
    %52 = arith.addf %49, %51 : vector<80x8xf32>
    %cst_28 = arith.constant 0.000000e+00 : f32
    %53 = vector.broadcast %cst_28 : f32 to vector<80x8xf32>
    %54 = arith.maximumf %52, %53 : vector<80x8xf32>
    %55 = vector.shape_cast %54 : vector<80x8xf32> to vector<10x8x8xf32>
    %56 = tpu.iota {dimensions = array<i32: 0>} : vector<10x8x8xi32>
    %c0_i32_29 = arith.constant 0 : i32
    %57 = vector.broadcast %c0_i32_29 : i32 to vector<10x8x8xi32>
    %58 = arith.cmpi eq, %56, %57 : vector<10x8x8xi32>
    %c0_i32_30 = arith.constant 0 : i32
    %59 = arith.cmpi eq, %9, %c0_i32_30 : i32
    %60 = vector.broadcast %59 : i1 to vector<10x8x8xi1>
    %61 = arith.andi %58, %60 : vector<10x8x8xi1>
    %c9_i32 = arith.constant 9 : i32
    %62 = vector.broadcast %c9_i32 : i32 to vector<10x8x8xi32>
    %63 = arith.cmpi eq, %56, %62 : vector<10x8x8xi32>
    %c0_i32_31 = arith.constant 0 : i32
    %64 = arith.cmpi eq, %9, %c0_i32_31 : i32
    %65 = vector.broadcast %64 : i1 to vector<10x8x8xi1>
    %66 = arith.andi %63, %65 : vector<10x8x8xi1>
    %67 = arith.ori %61, %66 : vector<10x8x8xi1>
    %cst_32 = arith.constant 0.000000e+00 : f32
    %68 = vector.broadcast %cst_32 : f32 to vector<10x8x8xf32>
    %69 = arith.select %67, %68, %55 : vector<10x8x8xi1>, vector<10x8x8xf32>
    %cst_33 = arith.constant 0.000000e+00 : f32
    %70 = vector.broadcast %cst_33 : f32 to vector<10x1x8xf32>
    %71 = tpu.concatenate %70, %69, %70 in 1 : vector<10x1x8xf32>, vector<10x8x8xf32>, vector<10x1x8xf32> -> vector<10x10x8xf32>
    %72 = vector.extract_strided_slice %71 {offsets = [0, 0, 0], sizes = [10, 8, 8], strides = [1, 1, 1]} : vector<10x10x8xf32> to vector<10x8x8xf32>
    %73 = vector.extract_strided_slice %71 {offsets = [0, 1, 0], sizes = [10, 8, 8], strides = [1, 1, 1]} : vector<10x10x8xf32> to vector<10x8x8xf32>
    %74 = vector.extract_strided_slice %71 {offsets = [0, 2, 0], sizes = [10, 8, 8], strides = [1, 1, 1]} : vector<10x10x8xf32> to vector<10x8x8xf32>
    %75 = tpu.concatenate %72, %73, %74 in 2 : vector<10x8x8xf32>, vector<10x8x8xf32>, vector<10x8x8xf32> -> vector<10x8x24xf32>
    %cst_34 = arith.constant 0.000000e+00 : f32
    %76 = vector.broadcast %cst_34 : f32 to vector<64x8xf32>
    %77 = vector.extract_strided_slice %75 {offsets = [0, 0, 0], sizes = [8, 8, 24], strides = [1, 1, 1]} : vector<10x8x24xf32> to vector<8x8x24xf32>
    %78 = vector.shape_cast %77 : vector<8x8x24xf32> to vector<64x24xf32>
    %79 = arith.truncf %78 : vector<64x24xf32> to vector<64x24xbf16>
    %c0_35 = arith.constant 0 : index
    %c0_36 = arith.constant 0 : index
    %c0_37 = arith.constant 0 : index
    %80 = vector.load %arg5[%c0_35, %c0_36, %c0_37] : memref<3x24x8xbf16, #tpu.memory_space<vmem>>, vector<1x24x8xbf16>
    %81 = vector.shape_cast %80 : vector<1x24x8xbf16> to vector<24x8xbf16>
    %cst_38 = arith.constant dense<0.000000e+00> : vector<64x8xf32>
    %82 = tpu.matmul %79, %81, %cst_38 {dimension_numbers = #tpu.dot_dimension_numbers<[1], [0], [0], [1], [0, 0, 1, 1], [], []>} : vector<64x24xbf16>, vector<24x8xbf16>, vector<64x8xf32> -> vector<64x8xf32>
    %83 = arith.addf %76, %82 : vector<64x8xf32>
    %84 = vector.extract_strided_slice %75 {offsets = [1, 0, 0], sizes = [8, 8, 24], strides = [1, 1, 1]} : vector<10x8x24xf32> to vector<8x8x24xf32>
    %85 = vector.shape_cast %84 : vector<8x8x24xf32> to vector<64x24xf32>
    %86 = arith.truncf %85 : vector<64x24xf32> to vector<64x24xbf16>
    %c1_39 = arith.constant 1 : index
    %c0_40 = arith.constant 0 : index
    %c0_41 = arith.constant 0 : index
    %87 = vector.load %arg5[%c1_39, %c0_40, %c0_41] : memref<3x24x8xbf16, #tpu.memory_space<vmem>>, vector<1x24x8xbf16>
    %88 = vector.shape_cast %87 : vector<1x24x8xbf16> to vector<24x8xbf16>
    %cst_42 = arith.constant dense<0.000000e+00> : vector<64x8xf32>
    %89 = tpu.matmul %86, %88, %cst_42 {dimension_numbers = #tpu.dot_dimension_numbers<[1], [0], [0], [1], [0, 0, 1, 1], [], []>} : vector<64x24xbf16>, vector<24x8xbf16>, vector<64x8xf32> -> vector<64x8xf32>
    %90 = arith.addf %83, %89 : vector<64x8xf32>
    %91 = vector.extract_strided_slice %75 {offsets = [2, 0, 0], sizes = [8, 8, 24], strides = [1, 1, 1]} : vector<10x8x24xf32> to vector<8x8x24xf32>
    %92 = vector.shape_cast %91 : vector<8x8x24xf32> to vector<64x24xf32>
    %93 = arith.truncf %92 : vector<64x24xf32> to vector<64x24xbf16>
    %c2_43 = arith.constant 2 : index
    %c0_44 = arith.constant 0 : index
    %c0_45 = arith.constant 0 : index
    %94 = vector.load %arg5[%c2_43, %c0_44, %c0_45] : memref<3x24x8xbf16, #tpu.memory_space<vmem>>, vector<1x24x8xbf16>
    %95 = vector.shape_cast %94 : vector<1x24x8xbf16> to vector<24x8xbf16>
    %cst_46 = arith.constant dense<0.000000e+00> : vector<64x8xf32>
    %96 = tpu.matmul %93, %95, %cst_46 {dimension_numbers = #tpu.dot_dimension_numbers<[1], [0], [0], [1], [0, 0, 1, 1], [], []>} : vector<64x24xbf16>, vector<24x8xbf16>, vector<64x8xf32> -> vector<64x8xf32>
    %97 = arith.addf %90, %96 : vector<64x8xf32>
    %c0_47 = arith.constant 0 : index
    %c0_48 = arith.constant 0 : index
    %98 = vector.load %arg6[%c0_47, %c0_48] : memref<1x8xf32, #tpu.memory_space<vmem>>, vector<1x8xf32>
    %99 = vector.broadcast %98 : vector<1x8xf32> to vector<64x8xf32>
    %100 = arith.mulf %97, %99 : vector<64x8xf32>
    %c0_49 = arith.constant 0 : index
    %c0_50 = arith.constant 0 : index
    %101 = vector.load %arg7[%c0_49, %c0_50] : memref<1x8xf32, #tpu.memory_space<vmem>>, vector<1x8xf32>
    %102 = vector.broadcast %101 : vector<1x8xf32> to vector<64x8xf32>
    %103 = arith.addf %100, %102 : vector<64x8xf32>
    %cst_51 = arith.constant 0.000000e+00 : f32
    %104 = vector.broadcast %cst_51 : f32 to vector<64x8xf32>
    %105 = arith.maximumf %103, %104 : vector<64x8xf32>
    %c0_52 = arith.constant 0 : index
    %c0_53 = arith.constant 0 : index
    %c0_54 = arith.constant 0 : index
    %106 = vector.load %arg8[%c0_52, %c0_53, %c0_54] : memref<1x64x8xf32, #tpu.memory_space<vmem>>, vector<1x64x8xf32>
    %107 = vector.shape_cast %106 : vector<1x64x8xf32> to vector<64x8xf32>
    %108 = vector.shape_cast %105 : vector<64x8xf32> to vector<1x64x8xf32>
    tpu.vector_store %arg8[%c0_52, %c0_53, %c0_54], %108 {strides = array<i32>} : memref<1x64x8xf32, #tpu.memory_space<vmem>>, vector<1x64x8xf32>,
    return
  }
  func.func @transform_0(%arg0: i32) -> (i32, i32, i32, i32, i32) {
    %c0_i32 = arith.constant 0 : i32
    %c0_i32_0 = arith.constant 0 : i32
    %c0_i32_1 = arith.constant 0 : i32
    %c0_i32_2 = arith.constant 0 : i32
    %c0_i32_3 = arith.constant 0 : i32
    return %arg0, %c0_i32, %c0_i32_0, %c0_i32_1, %c0_i32_2 : i32, i32, i32, i32, i32
  }
  func.func @transform_1(%arg0: i32) -> (i32, i32, i32) {
    %c0_i32 = arith.constant 0 : i32
    %c0_i32_0 = arith.constant 0 : i32
    %c0_i32_1 = arith.constant 0 : i32
    %c0_i32_2 = arith.constant 0 : i32
    return %c0_i32, %c0_i32_0, %c0_i32_1 : i32, i32, i32
  }
  func.func @transform_2(%arg0: i32) -> (i32, i32) {
    %c0_i32 = arith.constant 0 : i32
    %c0_i32_0 = arith.constant 0 : i32
    %c0_i32_1 = arith.constant 0 : i32
    return %c0_i32, %c0_i32_0 : i32, i32
  }
  func.func @transform_3(%arg0: i32) -> (i32, i32) {
    %c0_i32 = arith.constant 0 : i32
    %c0_i32_0 = arith.constant 0 : i32
    %c0_i32_1 = arith.constant 0 : i32
    return %c0_i32, %c0_i32_0 : i32, i32
  }
  func.func @transform_4(%arg0: i32) -> (i32, i32, i32) {
    %c0_i32 = arith.constant 0 : i32
    %c0_i32_0 = arith.constant 0 : i32
    %c0_i32_1 = arith.constant 0 : i32
    %c0_i32_2 = arith.constant 0 : i32
    return %c0_i32, %c0_i32_0, %c0_i32_1 : i32, i32, i32
  }
  func.func @transform_5(%arg0: i32) -> (i32, i32) {
    %c0_i32 = arith.constant 0 : i32
    %c0_i32_0 = arith.constant 0 : i32
    %c0_i32_1 = arith.constant 0 : i32
    return %c0_i32, %c0_i32_0 : i32, i32
  }
  func.func @transform_6(%arg0: i32) -> (i32, i32) {
    %c0_i32 = arith.constant 0 : i32
    %c0_i32_0 = arith.constant 0 : i32
    %c0_i32_1 = arith.constant 0 : i32
    return %c0_i32, %c0_i32_0 : i32, i32
  }
  func.func @transform_7(%arg0: i32) -> (i32, i32, i32) {
    %c0_i32 = arith.constant 0 : i32
    %c0_i32_0 = arith.constant 0 : i32
    %c0_i32_1 = arith.constant 0 : i32
    return %arg0, %c0_i32, %c0_i32_0 : i32, i32, i32
  }
}

</mosaic_0001>

<llo_original>
// kernel: tpu_custom_call.1
$region0: #{tpu_custom_call.1}
  #allocation0 [shape = 'u32[]', space=smem, size = 0x4, offset = 0x4, fixed_abs, tag = 'smem constant byte address 0x4 - core index']
  #allocation1 [shape = 'u32[144,128]{1,0:T(1,128)}', space=vmem, size = 0x12000, scoped, tag = 'internal scratch']
  %s0 = inlined_call_operand.vmem [shape: bf16[2,12,2,8,8], index: 0, kind: input, shape index: {}]
  %s1 = inlined_call_operand.vmem [shape: bf16[3,12,8], index: 1, kind: input, shape index: {}]
  %s2 = inlined_call_operand.vmem [shape: f32[1,8], index: 2, kind: input, shape index: {}]
  %s3 = inlined_call_operand.vmem [shape: f32[1,8], index: 3, kind: input, shape index: {}]
  %s4 = inlined_call_operand.vmem [shape: bf16[3,24,8], index: 4, kind: input, shape index: {}]
  %s5 = inlined_call_operand.vmem [shape: f32[1,8], index: 5, kind: input, shape index: {}]
  %s6 = inlined_call_operand.vmem [shape: f32[1,8], index: 6, kind: input, shape index: {}]
  %s7 = inlined_call_operand.vmem [shape: f32[2,64,8], index: 7, kind: output, shape index: {}]
  %s8 = sld [smem:[#allocation0]]
  $region61: #{tpu_custom_call.1} parent=0
    _
  %s10 = ssub.s32 1, %s8
  %s11 = scalar_select 0, %s10, %s8
  loop: start=0, step=1, limit=4
  $region2: #{tpu_custom_call.1} parent=0 // loop_pre_header
    _
  $region3: #{tpu_custom_call.1} parent=0 // loop_header
    %s13 = sphi 0, %s17
    %p14 = scmp.ge.s32.totalorder %s13, 4
    %s23 = sphi 0, %s25
    %s26 = sphi 0, %s23
    %s27 = sphi 0, %s26
    %s43 = sphi 0, %s27
    %s47 = sphi 0, %s47
    %s49 = sphi 0, %s47
    %s50 = sphi 0, %s49
    %s64 = sphi 0, %s50
    %s68 = sphi 0, %s68
    %s70 = sphi 0, %s68
    %s71 = sphi 0, %s70
    %s85 = sphi 0, %s71
    %s89 = sphi 0, %s89
    %s91 = sphi 0, %s89
    %s92 = sphi 0, %s91
    %s106 = sphi 0, %s92
    %s110 = sphi 0, %s110
    %s112 = sphi 0, %s110
    %s113 = sphi 0, %s112
    %s127 = sphi 0, %s113
    %s131 = sphi 0, %s131
    %s133 = sphi 0, %s131
    %s134 = sphi 0, %s133
    %s148 = sphi 0, %s134
    %s152 = sphi 0, %s152
    %s154 = sphi 0, %s152
    %s155 = sphi 0, %s154
    %s169 = sphi 0, %s155
    %s175 = sphi 0, %s177
    %s178 = sphi 0, %s175
    %s179 = sphi 0, %s178
    %s195 = sphi 0, %s179
  $region4: #{tpu_custom_call.1} parent=0 // loop_header_branch
    %16 = sbr.rel (%p14) target = $region8
  $region5: #{tpu_custom_call.1} parent=0 // loop_body
    %s18 = ssub.s32 %s13, 1
    %s19 = ssub.s32 %s13, 2
    %s20 = sadd.s32 %s13, 1
    %s21 = ssub.s32 %s13, %s20
    %p22 = scmp.eq.s32.totalorder %s21, 0
    %s24 = sadd.s32 %s23, 1
    %s25 = scalar_select %p22, %s23, %s24
    %p28 = pneg %p22
    %p29 = scmp.eq.s32.totalorder %s13, 1
    %p30 = por %p28, %p29
    %p31 = scmp.ne.s32.totalorder %s23, %s26
    %p32 = scmp.eq.s32.totalorder %s13, 0
    %p33 = por %p31, %p32
    %p34 = scmp.ne.s32.totalorder %s23, %s26
    %p35 = scmp.eq.s32.totalorder %s18, 1
    %p36 = por %p34, %p35
    %p37 = scmp.ne.s32.totalorder %s26, %s27
    %p38 = scmp.eq.s32.totalorder %s18, 0
    %p39 = por %p37, %p38
    %p40 = scmp.ne.s32.totalorder %s26, %s27
    %p41 = scmp.eq.s32.totalorder %s19, 1
    %p42 = por %p40, %p41
    %p44 = scmp.ne.s32.totalorder %s27, %s43
    %p45 = scmp.eq.s32.totalorder %s19, 0
    %p46 = por %p44, %p45
    %s48 = sadd.s32 %s47, 1
    %p51 = scmp.eq.s32.totalorder %s13, 1
    %p52 = scmp.ne.s32.totalorder %s47, %s49
    %p53 = scmp.eq.s32.totalorder %s13, 0
    %p54 = por %p52, %p53
    %p55 = scmp.ne.s32.totalorder %s47, %s49
    %p56 = scmp.eq.s32.totalorder %s18, 1
    %p57 = por %p55, %p56
    %p58 = scmp.ne.s32.totalorder %s49, %s50
    %p59 = scmp.eq.s32.totalorder %s18, 0
    %p60 = por %p58, %p59
    %p61 = scmp.ne.s32.totalorder %s49, %s50
    %p62 = scmp.eq.s32.totalorder %s19, 1
    %p63 = por %p61, %p62
    %p65 = scmp.ne.s32.totalorder %s50, %s64
    %p66 = scmp.eq.s32.totalorder %s19, 0
    %p67 = por %p65, %p66
    %s69 = sadd.s32 %s68, 1
    %p72 = scmp.eq.s32.totalorder %s13, 1
    %p73 = scmp.ne.s32.totalorder %s68, %s70
    %p74 = scmp.eq.s32.totalorder %s13, 0
    %p75 = por %p73, %p74
    %p76 = scmp.ne.s32.totalorder %s68, %s70
    %p77 = scmp.eq.s32.totalorder %s18, 1
    %p78 = por %p76, %p77
    %p79 = scmp.ne.s32.totalorder %s70, %s71
    %p80 = scmp.eq.s32.totalorder %s18, 0
    %p81 = por %p79, %p80
    %p82 = scmp.ne.s32.totalorder %s70, %s71
    %p83 = scmp.eq.s32.totalorder %s19, 1
    %p84 = por %p82, %p83
    %p86 = scmp.ne.s32.totalorder %s71, %s85
    %p87 = scmp.eq.s32.totalorder %s19, 0
    %p88 = por %p86, %p87
    %s90 = sadd.s32 %s89, 1
    %p93 = scmp.eq.s32.totalorder %s13, 1
    %p94 = scmp.ne.s32.totalorder %s89, %s91
    %p95 = scmp.eq.s32.totalorder %s13, 0
    %p96 = por %p94, %p95
    %p97 = scmp.ne.s32.totalorder %s89, %s91
    %p98 = scmp.eq.s32.totalorder %s18, 1
    %p99 = por %p97, %p98
    %p100 = scmp.ne.s32.totalorder %s91, %s92
    %p101 = scmp.eq.s32.totalorder %s18, 0
    %p102 = por %p100, %p101
    %p103 = scmp.ne.s32.totalorder %s91, %s92
    %p104 = scmp.eq.s32.totalorder %s19, 1
    %p105 = por %p103, %p104
    %p107 = scmp.ne.s32.totalorder %s92, %s106
    %p108 = scmp.eq.s32.totalorder %s19, 0
    %p109 = por %p107, %p108
    %s111 = sadd.s32 %s110, 1
    %p114 = scmp.eq.s32.totalorder %s13, 1
    %p115 = scmp.ne.s32.totalorder %s110, %s112
    %p116 = scmp.eq.s32.totalorder %s13, 0
    %p117 = por %p115, %p116
    %p118 = scmp.ne.s32.totalorder %s110, %s112
    %p119 = scmp.eq.s32.totalorder %s18, 1
    %p120 = por %p118, %p119
    %p121 = scmp.ne.s32.totalorder %s112, %s113
    %p122 = scmp.eq.s32.totalorder %s18, 0
    %p123 = por %p121, %p122
    %p124 = scmp.ne.s32.totalorder %s112, %s113
    %p125 = scmp.eq.s32.totalorder %s19, 1
    %p126 = por %p124, %p125
    %p128 = scmp.ne.s32.totalorder %s113, %s127
    %p129 = scmp.eq.s32.totalorder %s19, 0
    %p130 = por %p128, %p129
    %s132 = sadd.s32 %s131, 1
    %p135 = scmp.eq.s32.totalorder %s13, 1
    %p136 = scmp.ne.s32.totalorder %s131, %s133
    %p137 = scmp.eq.s32.totalorder %s13, 0
    %p138 = por %p136, %p137
    %p139 = scmp.ne.s32.totalorder %s131, %s133
    %p140 = scmp.eq.s32.totalorder %s18, 1
    %p141 = por %p139, %p140
    %p142 = scmp.ne.s32.totalorder %s133, %s134
    %p143 = scmp.eq.s32.totalorder %s18, 0
    %p144 = por %p142, %p143
    %p145 = scmp.ne.s32.totalorder %s133, %s134
    %p146 = scmp.eq.s32.totalorder %s19, 1
    %p147 = por %p145, %p146
    %p149 = scmp.ne.s32.totalorder %s134, %s148
    %p150 = scmp.eq.s32.totalorder %s19, 0
    %p151 = por %p149, %p150
    %s153 = sadd.s32 %s152, 1
    %p156 = scmp.eq.s32.totalorder %s13, 1
    %p157 = scmp.ne.s32.totalorder %s152, %s154
    %p158 = scmp.eq.s32.totalorder %s13, 0
    %p159 = por %p157, %p158
    %p160 = scmp.ne.s32.totalorder %s152, %s154
    %p161 = scmp.eq.s32.totalorder %s18, 1
    %p162 = por %p160, %p161
    %p163 = scmp.ne.s32.totalorder %s154, %s155
    %p164 = scmp.eq.s32.totalorder %s18, 0
    %p165 = por %p163, %p164
    %p166 = scmp.ne.s32.totalorder %s154, %s155
    %p167 = scmp.eq.s32.totalorder %s19, 1
    %p168 = por %p166, %p167
    %p170 = scmp.ne.s32.totalorder %s155, %s169
    %p171 = scmp.eq.s32.totalorder %s19, 0
    %p172 = por %p170, %p171
    %s173 = ssub.s32 %s13, %s20
    %p174 = scmp.eq.s32.totalorder %s173, 0
    %s176 = sadd.s32 %s175, 1
    %s177 = scalar_select %p174, %s175, %s176
    %p180 = pneg %p174
    %p181 = scmp.eq.s32.totalorder %s13, 1
    %p182 = por %p180, %p181
    %p183 = scmp.ne.s32.totalorder %s175, %s178
    %p184 = scmp.eq.s32.totalorder %s13, 0
    %p185 = por %p183, %p184
    %p186 = scmp.ne.s32.totalorder %s175, %s178
    %p187 = scmp.eq.s32.totalorder %s18, 1
    %p188 = por %p186, %p187
    %p189 = scmp.ne.s32.totalorder %s178, %s179
    %p190 = scmp.eq.s32.totalorder %s18, 0
    %p191 = por %p189, %p190
    %p192 = scmp.ne.s32.totalorder %s178, %s179
    %p193 = scmp.eq.s32.totalorder %s19, 1
    %p194 = por %p192, %p193
    %p196 = scmp.ne.s32.totalorder %s179, %s195
    %p197 = scmp.eq.s32.totalorder %s19, 0
    %p198 = por %p196, %p197
    %p199 = scmp.le.s32.totalorder 1, %s13
    %p200 = scmp.lt.s32.totalorder %s13, 3
    %p201 = pnand %p199, %p200
    %p202 = pneg %p201
    // Predicated region
    $region9: #{tpu_custom_call.1} parent=5 // pred_check
      _
    $region10: #{tpu_custom_call.1} parent=5 // pred_check_branch
      %204 = sbr.rel (%p201) target = $region12
    $region11: #{tpu_custom_call.1} parent=5 // pred_region
      %s205 = ssub.s32 %s13, 1
      // Predicated region
      $region13: #{tpu_custom_call.1} parent=11 // pred_check
        %p206 = pneg %p60
      $region14: #{tpu_custom_call.1} parent=11 // pred_check_branch
        %208 = sbr.rel (%p206) target = $region16
      $region15: #{tpu_custom_call.1} parent=11 // pred_region
        _
      $region16: #{tpu_custom_call.1} parent=11 // pred_fallthru
        _
      // Predicated region
      $region17: #{tpu_custom_call.1} parent=11 // pred_check
        %p209 = pneg %p81
      $region18: #{tpu_custom_call.1} parent=11 // pred_check_branch
        %211 = sbr.rel (%p209) target = $region20
      $region19: #{tpu_custom_call.1} parent=11 // pred_region
        _
      $region20: #{tpu_custom_call.1} parent=11 // pred_fallthru
        _
      // Predicated region
      $region21: #{tpu_custom_call.1} parent=11 // pred_check
        %p212 = pneg %p102
      $region22: #{tpu_custom_call.1} parent=11 // pred_check_branch
        %214 = sbr.rel (%p212) target = $region24
      $region23: #{tpu_custom_call.1} parent=11 // pred_region
        _
      $region24: #{tpu_custom_call.1} parent=11 // pred_fallthru
        _
      // Predicated region
      $region25: #{tpu_custom_call.1} parent=11 // pred_check
        %p215 = pneg %p123
      $region26: #{tpu_custom_call.1} parent=11 // pred_check_branch
        %217 = sbr.rel (%p215) target = $region28
      $region27: #{tpu_custom_call.1} parent=11 // pred_region
        _
      $region28: #{tpu_custom_call.1} parent=11 // pred_fallthru
        _
      // Predicated region
      $region29: #{tpu_custom_call.1} parent=11 // pred_check
        %p218 = pneg %p144
      $region30: #{tpu_custom_call.1} parent=11 // pred_check_branch
        %220 = sbr.rel (%p218) target = $region32
      $region31: #{tpu_custom_call.1} parent=11 // pred_region
        _
      $region32: #{tpu_custom_call.1} parent=11 // pred_fallthru
        _
      // Predicated region
      $region33: #{tpu_custom_call.1} parent=11 // pred_check
        %p221 = pneg %p165
      $region34: #{tpu_custom_call.1} parent=11 // pred_check_branch
        %223 = sbr.rel (%p221) target = $region36
      $region35: #{tpu_custom_call.1} parent=11 // pred_region
        _
      $region36: #{tpu_custom_call.1} parent=11 // pred_fallthru
        _
    $region12: #{tpu_custom_call.1} parent=5 // pred_fallthru
      _
    %p224 = scmp.lt.s32.totalorder %s13, 2
    // Predicated region
    $region37: #{tpu_custom_call.1} parent=5 // pred_check
      %p225 = pneg %p224
    $region38: #{tpu_custom_call.1} parent=5 // pred_check_branch
      %227 = sbr.rel (%p225) target = $region40
    $region39: #{tpu_custom_call.1} parent=5 // pred_region
      // Predicated region
      $region41: #{tpu_custom_call.1} parent=39 // pred_check
        %p228 = pneg %p33
      $region42: #{tpu_custom_call.1} parent=39 // pred_check_branch
        %230 = sbr.rel (%p228) target = $region44
      $region43: #{tpu_custom_call.1} parent=39 // pred_region
        %p231 = scmp.lt.s32.totalorder %s13, 1
        %s232 = scalar_select %p231, %s13, 1
        %s233 = smul.addr %s232, 24
        %s234 = smul.addr %s233, 4
        %s235 = scalar_lea.vmem %s0, %s234
      $region44: #{tpu_custom_call.1} parent=39 // pred_fallthru
        _
    $region40: #{tpu_custom_call.1} parent=5 // pred_fallthru
      _
    %p236 = scmp.le.s32.totalorder 1, %s13
    %p237 = scmp.lt.s32.totalorder %s13, 3
    %p238 = pnand %p236, %p237
    %p239 = pneg %p238
    // Predicated region
    $region45: #{tpu_custom_call.1} parent=5 // pred_check
      _
    $region46: #{tpu_custom_call.1} parent=5 // pred_check_branch
      %241 = sbr.rel (%p238) target = $region48
    $region47: #{tpu_custom_call.1} parent=5 // pred_region
      %s242 = ssub.s32 %s13, 1
      %p243 = scmp.lt.s32.totalorder %s18, 1
      %s244 = scalar_select %p243, %s18, 1
      %s245 = smul.addr %s244, 24
      %s246 = smul.addr %s245, 4
      %s247 = scalar_lea.vmem %s0, %s246
      %p248 = pneg %p39
      %p249 = pneg %p36
      %p250 = pneg %p60
      %p251 = pneg %p57
      %p252 = pneg %p81
      %p253 = pneg %p78
      %p254 = pneg %p102
      %p255 = pneg %p99
      %p256 = pneg %p123
      %p257 = pneg %p120
      %p258 = pneg %p144
      %p259 = pneg %p141
      %p260 = pneg %p165
      %p261 = pneg %p162
      %p262 = pneg %p191
      %p263 = pneg %p188
      %p264 = scmp.lt.s32.totalorder %s18, 1
      %s265 = scalar_select %p264, %s18, 1
      %s266 = smul.addr %s265, 8
      %s267 = smul.addr %s266, 8
      %s268 = scalar_lea.vmem %s7, %s267
      %p269 = scmp.lt.s32.totalorder %s18, 1
      %s270 = scalar_select %p269, %s18, 1
      %s271 = smul.addr %s270, 24
      %s272 = smul.addr %s271, 4
      %s273 = scalar_lea.vmem %s0, %s272
      %p274 = scmp.lt.s32.totalorder %s18, 1
      %s275 = scalar_select %p274, %s18, 1
      %s276 = smul.addr %s275, 8
      %s277 = smul.addr %s276, 8
      %s278 = scalar_lea.vmem %s7, %s277
      %v280 = vld [vmem:[%s273] sm:$0xf]
      %v281 = vld [vmem:[%s273 + $0x8] sm:$0xf]
      %v282 = vld [vmem:[%s273 + $0x10] sm:$0xf]
      %v283 = vld [vmem:[%s273 + $0x18] sm:$0xf]
      %v284 = vld [vmem:[%s273 + $0x20] sm:$0xf]
      %v285 = vld [vmem:[%s273 + $0x28] sm:$0xf]
      %v286 = vld [vmem:[%s273 + $0x30] sm:$0xf]
      %v287 = vld [vmem:[%s273 + $0x38] sm:$0xf]
      %v288 = vld [vmem:[%s273 + $0x40] sm:$0xf]
      %v289 = vld [vmem:[%s273 + $0x48] sm:$0xf]
      %v290 = vld [vmem:[%s273 + $0x50] sm:$0xf]
      %v291 = vld [vmem:[%s273 + $0x58] sm:$0xf]
      %s292 = scalar_lea.vmem %s273, 4
      %v293 = vld [vmem:[%s292] sm:$0xf]
      %v294 = vld [vmem:[%s292 + $0x8] sm:$0xf]
      %v295 = vld [vmem:[%s292 + $0x10] sm:$0xf]
      %v296 = vld [vmem:[%s292 + $0x18] sm:$0xf]
      %v297 = vld [vmem:[%s292 + $0x20] sm:$0xf]
      %v298 = vld [vmem:[%s292 + $0x28] sm:$0xf]
      %v299 = vld [vmem:[%s292 + $0x30] sm:$0xf]
      %v300 = vld [vmem:[%s292 + $0x38] sm:$0xf]
      %v301 = vld [vmem:[%s292 + $0x40] sm:$0xf]
      %v302 = vld [vmem:[%s292 + $0x48] sm:$0xf]
      %v303 = vld [vmem:[%s292 + $0x50] sm:$0xf]
      %v304 = vld [vmem:[%s292 + $0x58] sm:$0xf]
      %v305 = vmax.bf16 %v280, %v293
      %v306 = vmax.bf16 %v281, %v294
      %v307 = vmax.bf16 %v282, %v295
      %v308 = vmax.bf16 %v283, %v296
      %v309 = vmax.bf16 %v284, %v297
      %v310 = vmax.bf16 %v285, %v298
      %v311 = vmax.bf16 %v286, %v299
      %v312 = vmax.bf16 %v287, %v300
      %v313 = vmax.bf16 %v288, %v301
      %v314 = vmax.bf16 %v289, %v302
      %v315 = vmax.bf16 %v290, %v303
      %v316 = vmax.bf16 %v291, %v304
      %329 = vrot.lane.b32.xlu0 %v305, 124
      %v330 = vpop.permute.xlu0 %329
      %331 = vrot.lane.b32.xlu0 %v306, 124
      %v332 = vpop.permute.xlu0 %331
      %333 = vrot.lane.b32.xlu0 %v307, 124
      %v334 = vpop.permute.xlu0 %333
      %335 = vrot.lane.b32.xlu0 %v308, 124
      %v336 = vpop.permute.xlu0 %335
      %337 = vrot.lane.b32.xlu0 %v309, 124
      %v338 = vpop.permute.xlu0 %337
      %339 = vrot.lane.b32.xlu0 %v310, 124
      %v340 = vpop.permute.xlu0 %339
      %341 = vrot.lane.b32.xlu0 %v311, 124
      %v342 = vpop.permute.xlu0 %341
      %343 = vrot.lane.b32.xlu0 %v312, 124
      %v344 = vpop.permute.xlu0 %343
      %345 = vrot.lane.b32.xlu0 %v313, 124
      %v346 = vpop.permute.xlu0 %345
      %347 = vrot.lane.b32.xlu0 %v314, 124
      %v348 = vpop.permute.xlu0 %347
      %349 = vrot.lane.b32.xlu0 %v315, 124
      %v350 = vpop.permute.xlu0 %349
      %351 = vrot.lane.b32.xlu0 %v316, 124
      %v352 = vpop.permute.xlu0 %351
      %v365 = vmax.bf16 %v305, %v330
      %v366 = vmax.bf16 %v306, %v332
      %v367 = vmax.bf16 %v307, %v334
      %v368 = vmax.bf16 %v308, %v336
      %v369 = vmax.bf16 %v309, %v338
      %v370 = vmax.bf16 %v310, %v340
      %v371 = vmax.bf16 %v311, %v342
      %v372 = vmax.bf16 %v312, %v344
      %v373 = vmax.bf16 %v313, %v346
      %v374 = vmax.bf16 %v314, %v348
      %v375 = vmax.bf16 %v315, %v350
      %v376 = vmax.bf16 %v316, %v352
      %v377 = vunpack.c.l.bf16 %v365
      %v378 = vunpack.c.l.bf16 %v366
      %v379 = vunpack.c.l.bf16 %v367
      %v380 = vunpack.c.l.bf16 %v368
      %v381 = vunpack.c.l.bf16 %v369
      %v382 = vunpack.c.l.bf16 %v370
      %v383 = vunpack.c.l.bf16 %v371
      %v384 = vunpack.c.l.bf16 %v372
      %v385 = vunpack.c.l.bf16 %v373
      %v386 = vunpack.c.l.bf16 %v374
      %v387 = vunpack.c.l.bf16 %v375
      %v388 = vunpack.c.l.bf16 %v376
      %v401 = vrot.slane %v377, 7
      %v402 = vrot.slane %v378, 7
      %v403 = vrot.slane %v379, 7
      %v404 = vrot.slane %v380, 7
      %v405 = vrot.slane %v381, 7
      %v406 = vrot.slane %v382, 7
      %v407 = vrot.slane %v383, 7
      %v408 = vrot.slane %v384, 7
      %v409 = vrot.slane %v385, 7
      %v410 = vrot.slane %v386, 7
      %v411 = vrot.slane %v387, 7
      %v412 = vrot.slane %v388, 7
      %vm425 = vcmask 1040384
      %v426 = vsel %vm425, 0.0, %v401
      %v427 = vsel %vm425, 0.0, %v402
      %v428 = vsel %vm425, 0.0, %v403
      %v429 = vsel %vm425, 0.0, %v404
      %v430 = vsel %vm425, 0.0, %v405
      %v431 = vsel %vm425, 0.0, %v406
      %v432 = vsel %vm425, 0.0, %v407
      %v433 = vsel %vm425, 0.0, %v408
      %v434 = vsel %vm425, 0.0, %v409
      %v435 = vsel %vm425, 0.0, %v410
      %v436 = vsel %vm425, 0.0, %v411
      %v437 = vsel %vm425, 0.0, %v412
      %v438 = vsel %vm425, %v401, 0.0
      %v439 = vsel %vm425, %v402, 0.0
      %v440 = vsel %vm425, %v403, 0.0
      %v441 = vsel %vm425, %v404, 0.0
      %v442 = vsel %vm425, %v405, 0.0
      %v443 = vsel %vm425, %v406, 0.0
      %v444 = vsel %vm425, %v407, 0.0
      %v445 = vsel %vm425, %v408, 0.0
      %v446 = vsel %vm425, %v409, 0.0
      %v447 = vsel %vm425, %v410, 0.0
      %v448 = vsel %vm425, %v411, 0.0
      %v449 = vsel %vm425, %v412, 0.0
      %vm474 = vcmask 1046528
      %v475 = vrot.slane %v426, 1
      %v476 = vrot.slane %v438, 1
      %v477 = vsel %vm474, %v475, %v476
      %v478 = vrot.slane %v427, 1
      %v479 = vrot.slane %v439, 1
      %v480 = vsel %vm474, %v478, %v479
      %v481 = vrot.slane %v428, 1
      %v482 = vrot.slane %v440, 1
      %v483 = vsel %vm474, %v481, %v482
      %v484 = vrot.slane %v429, 1
      %v485 = vrot.slane %v441, 1
      %v486 = vsel %vm474, %v484, %v485
      %v487 = vrot.slane %v430, 1
      %v488 = vrot.slane %v442, 1
      %v489 = vsel %vm474, %v487, %v488
      %v490 = vrot.slane %v431, 1
      %v491 = vrot.slane %v443, 1
      %v492 = vsel %vm474, %v490, %v491
      %v493 = vrot.slane %v432, 1
      %v494 = vrot.slane %v444, 1
      %v495 = vsel %vm474, %v493, %v494
      %v496 = vrot.slane %v433, 1
      %v497 = vrot.slane %v445, 1
      %v498 = vsel %vm474, %v496, %v497
      %v499 = vrot.slane %v434, 1
      %v500 = vrot.slane %v446, 1
      %v501 = vsel %vm474, %v499, %v500
      %v502 = vrot.slane %v435, 1
      %v503 = vrot.slane %v447, 1
      %v504 = vsel %vm474, %v502, %v503
      %v505 = vrot.slane %v436, 1
      %v506 = vrot.slane %v448, 1
      %v507 = vsel %vm474, %v505, %v506
      %v508 = vrot.slane %v437, 1
      %v509 = vrot.slane %v449, 1
      %v510 = vsel %vm474, %v508, %v509
      %511 = vrot.lane.b32.xlu0 %v477, 4
      %v512 = vpop.permute.xlu0 %511
      %513 = vrot.lane.b32.xlu0 %v480, 4
      %v514 = vpop.permute.xlu0 %513
      %515 = vrot.lane.b32.xlu0 %v483, 4
      %v516 = vpop.permute.xlu0 %515
      %517 = vrot.lane.b32.xlu0 %v486, 4
      %v518 = vpop.permute.xlu0 %517
      %519 = vrot.lane.b32.xlu0 %v489, 4
      %v520 = vpop.permute.xlu0 %519
      %521 = vrot.lane.b32.xlu0 %v492, 4
      %v522 = vpop.permute.xlu0 %521
      %523 = vrot.lane.b32.xlu0 %v495, 4
      %v524 = vpop.permute.xlu0 %523
      %525 = vrot.lane.b32.xlu0 %v498, 4
      %v526 = vpop.permute.xlu0 %525
      %527 = vrot.lane.b32.xlu0 %v501, 4
      %v528 = vpop.permute.xlu0 %527
      %529 = vrot.lane.b32.xlu0 %v504, 4
      %v530 = vpop.permute.xlu0 %529
      %531 = vrot.lane.b32.xlu0 %v507, 4
      %v532 = vpop.permute.xlu0 %531
      %533 = vrot.lane.b32.xlu0 %v510, 4
      %v534 = vpop.permute.xlu0 %533
      %vm547 = vcmask 1045504
      %v548 = vrot.slane %v426, 2
      %v549 = vrot.slane %v438, 2
      %v550 = vsel %vm547, %v548, %v549
      %v551 = vrot.slane %v427, 2
      %v552 = vrot.slane %v439, 2
      %v553 = vsel %vm547, %v551, %v552
      %v554 = vrot.slane %v428, 2
      %v555 = vrot.slane %v440, 2
      %v556 = vsel %vm547, %v554, %v555
      %v557 = vrot.slane %v429, 2
      %v558 = vrot.slane %v441, 2
      %v559 = vsel %vm547, %v557, %v558
      %v560 = vrot.slane %v430, 2
      %v561 = vrot.slane %v442, 2
      %v562 = vsel %vm547, %v560, %v561
      %v563 = vrot.slane %v431, 2
      %v564 = vrot.slane %v443, 2
      %v565 = vsel %vm547, %v563, %v564
      %v566 = vrot.slane %v432, 2
      %v567 = vrot.slane %v444, 2
      %v568 = vsel %vm547, %v566, %v567
      %v569 = vrot.slane %v433, 2
      %v570 = vrot.slane %v445, 2
      %v571 = vsel %vm547, %v569, %v570
      %v572 = vrot.slane %v434, 2
      %v573 = vrot.slane %v446, 2
      %v574 = vsel %vm547, %v572, %v573
      %v575 = vrot.slane %v435, 2
      %v576 = vrot.slane %v447, 2
      %v577 = vsel %vm547, %v575, %v576
      %v578 = vrot.slane %v436, 2
      %v579 = vrot.slane %v448, 2
      %v580 = vsel %vm547, %v578, %v579
      %v581 = vrot.slane %v437, 2
      %v582 = vrot.slane %v449, 2
      %v583 = vsel %vm547, %v581, %v582
      %584 = vrot.lane.b32.xlu0 %v550, 8
      %v585 = vpop.permute.xlu0 %584
      %586 = vrot.lane.b32.xlu0 %v553, 8
      %v587 = vpop.permute.xlu0 %586
      %588 = vrot.lane.b32.xlu0 %v556, 8
      %v589 = vpop.permute.xlu0 %588
      %590 = vrot.lane.b32.xlu0 %v559, 8
      %v591 = vpop.permute.xlu0 %590
      %592 = vrot.lane.b32.xlu0 %v562, 8
      %v593 = vpop.permute.xlu0 %592
      %594 = vrot.lane.b32.xlu0 %v565, 8
      %v595 = vpop.permute.xlu0 %594
      %596 = vrot.lane.b32.xlu0 %v568, 8
      %v597 = vpop.permute.xlu0 %596
      %598 = vrot.lane.b32.xlu0 %v571, 8
      %v599 = vpop.permute.xlu0 %598
      %600 = vrot.lane.b32.xlu0 %v574, 8
      %v601 = vpop.permute.xlu0 %600
      %602 = vrot.lane.b32.xlu0 %v577, 8
      %v603 = vpop.permute.xlu0 %602
      %604 = vrot.lane.b32.xlu0 %v580, 8
      %v605 = vpop.permute.xlu0 %604
      %606 = vrot.lane.b32.xlu0 %v583, 8
      %v607 = vpop.permute.xlu0 %606
      %vm620 = vcmask 31744
      %v621 = vsel %vm620, %v426, %v512
      %v622 = vsel %vm620, %v427, %v514
      %v623 = vsel %vm620, %v428, %v516
      %v624 = vsel %vm620, %v429, %v518
      %v625 = vsel %vm620, %v430, %v520
      %v626 = vsel %vm620, %v431, %v522
      %v627 = vsel %vm620, %v432, %v524
      %v628 = vsel %vm620, %v433, %v526
      %v629 = vsel %vm620, %v434, %v528
      %v630 = vsel %vm620, %v435, %v530
      %v631 = vsel %vm620, %v436, %v532
      %v632 = vsel %vm620, %v437, %v534
      %vm633 = vcmask 64512
      %v634 = vsel %vm633, %v621, %v585
      %v635 = vsel %vm633, %v622, %v587
      %v636 = vsel %vm633, %v623, %v589
      %v637 = vsel %vm633, %v624, %v591
      %v638 = vsel %vm633, %v625, %v593
      %v639 = vsel %vm633, %v626, %v595
      %v640 = vsel %vm633, %v627, %v597
      %v641 = vsel %vm633, %v628, %v599
      %v642 = vsel %vm633, %v629, %v601
      %v643 = vsel %vm633, %v630, %v603
      %v644 = vsel %vm633, %v631, %v605
      %v645 = vsel %vm633, %v632, %v607
      %v646 = vpack.c.bf16 %v635, %v634
      %v647 = vpack.c.bf16 %v637, %v636
      %v648 = vpack.c.bf16 %v639, %v638
      %v649 = vpack.c.bf16 %v641, %v640
      %v650 = vpack.c.bf16 %v643, %v642
      %v651 = vld [vmem:[%s1] sm:$0xf]
      %v652 = vld [vmem:[%s1 + $0x4] sm:$0x3]
      %v653 = vpack.c.bf16 %v636, %v635
      %v654 = vpack.c.bf16 %v638, %v637
      %v655 = vpack.c.bf16 %v640, %v639
      %v656 = vpack.c.bf16 %v642, %v641
      %v657 = vpack.c.bf16 %v644, %v643
      %s658 = scalar_lea.vmem %s1, 8
      %v659 = vld [vmem:[%s658] sm:$0xf]
      %v660 = vld [vmem:[%s658 + $0x4] sm:$0x3]
      %v663 = vunpack.c.l.b16 %v659
      %v664 = vunpack.c.l.b16 %v660
      %v665 = vpack.c.b16 %v664, %v663
      %vm666 = vcmask 97280
      %v668 = vsel %vm666, %v653, 0
      %v671 = vsel %vm666, %v654, 0
      %v674 = vsel %vm666, %v655, 0
      %v677 = vsel %vm666, %v656, 0
      %v680 = vsel %vm666, %v657, 0
      %v683 = vsel %vm547, %v665, 0
      %685 = vmatprep.subr.bf16.mxu0 0
      %686 = vmatpush1.bf16.msra.mxu0 %v683
      %687 = vmatprep.subr.bf16.mxu0 0
      %688 = vmatpush1.bf16.msra.mxu0 0
      %689 = vmatprep.subr.bf16.mxu0 0
      %690 = vmatpush1.bf16.msra.mxu0 0
      %691 = vmatprep.subr.bf16.mxu0 0
      %692 = vmatpush1.bf16.msra.mxu0 0
      %693 = vmatprep.subr.bf16.mxu0 0
      %694 = vmatpush1.bf16.msra.mxu0 0
      %695 = vmatprep.subr.bf16.mxu0 0
      %696 = vmatpush1.bf16.msra.mxu0 0
      %697 = vmatprep.subr.bf16.mxu0 0
      %698 = vmatpush1.bf16.msra.mxu0 0
      %699 = vmatprep.subr.bf16.mxu0 0
      %700 = vmatpush1.bf16.msra.mxu0 0
      %701 = vmatprep.subr.bf16.mxu0 0
      %702 = vmatpush1.bf16.msra.mxu0 0
      %703 = vmatprep.subr.bf16.mxu0 0
      %704 = vmatpush1.bf16.msra.mxu0 0
      %705 = vmatprep.subr.bf16.mxu0 0
      %706 = vmatpush1.bf16.msra.mxu0 0
      %707 = vmatprep.subr.bf16.mxu0 0
      %708 = vmatpush1.bf16.msra.mxu0 0
      %709 = vmatprep.subr.bf16.mxu0 0
      %710 = vmatpush1.bf16.msra.mxu0 0
      %711 = vmatprep.subr.bf16.mxu0 0
      %712 = vmatpush1.bf16.msra.mxu0 0
      %713 = vmatprep.subr.bf16.mxu0 0
      %714 = vmatpush1.bf16.msra.mxu0 0
      %715 = vmatprep.subr.bf16.mxu0 0
      %716 = vmatpush1.bf16.msra.mxu0 0
      %717 = vmatprep.mubr.bf16.mxu0 0
      %718 = vmatmul.mubr.bf16.gmra.mrb[0].mxu0 %v668
      %v719 = vpop.f32.mrb[0].mxu0
      %v720 = vadd.f32 0.0, %v719
      %v721 = vpop.f32.mrb[0].mxu0
      %v722 = vpop.f32.mrb[0].mxu0
      %v723 = vadd.f32 0.0, %v722
      %v724 = vpop.f32.mrb[0].mxu0
      %725 = vmatprep.mubr.bf16.mxu0 0
      %726 = vmatmul.mubr.bf16.gmra.mrb[0].mxu0 %v671
      %v727 = vpop.f32.mrb[0].mxu0
      %v728 = vadd.f32 0.0, %v727
      %v729 = vpop.f32.mrb[0].mxu0
      %v730 = vpop.f32.mrb[0].mxu0
      %v731 = vadd.f32 0.0, %v730
      %v732 = vpop.f32.mrb[0].mxu0
      %733 = vmatprep.mubr.bf16.mxu0 0
      %734 = vmatmul.mubr.bf16.gmra.mrb[0].mxu0 %v674
      %v735 = vpop.f32.mrb[0].mxu0
      %v736 = vadd.f32 0.0, %v735
      %v737 = vpop.f32.mrb[0].mxu0
      %v738 = vpop.f32.mrb[0].mxu0
      %v739 = vadd.f32 0.0, %v738
      %v740 = vpop.f32.mrb[0].mxu0
      %741 = vmatprep.mubr.bf16.mxu0 0
      %742 = vmatmul.mubr.bf16.gmra.mrb[0].mxu0 %v677
      %v743 = vpop.f32.mrb[0].mxu0
      %v744 = vadd.f32 0.0, %v743
      %v745 = vpop.f32.mrb[0].mxu0
      %v746 = vpop.f32.mrb[0].mxu0
      %v747 = vadd.f32 0.0, %v746
      %v748 = vpop.f32.mrb[0].mxu0
      %749 = vmatprep.mubr.bf16.mxu0 0
      %750 = vmatmul.mubr.bf16.gmra.mrb[0].mxu0 %v680
      %v751 = vpop.f32.mrb[0].mxu0
      %v752 = vadd.f32 0.0, %v751
      %v753 = vpop.f32.mrb[0].mxu0
      %v754 = vpop.f32.mrb[0].mxu0
      %v755 = vadd.f32 0.0, %v754
      %v756 = vpop.f32.mrb[0].mxu0
      %757 = vdwg.mxu0
      %v760 = vunpack.c.l.b16 %v651
      %v761 = vunpack.c.l.b16 %v652
      %v762 = vpack.c.b16 %v761, %v760
      %v764 = vsel %vm666, %v646, 0
      %v767 = vsel %vm666, %v647, 0
      %v770 = vsel %vm666, %v648, 0
      %v773 = vsel %vm666, %v649, 0
      %v776 = vsel %vm666, %v650, 0
      %v779 = vsel %vm547, %v762, 0
      %781 = vmatprep.subr.bf16.mxu0 0
      %782 = vmatpush1.bf16.msra.mxu0 %v779
      %783 = vmatprep.subr.bf16.mxu0 0
      %784 = vmatpush1.bf16.msra.mxu0 0
      %785 = vmatprep.subr.bf16.mxu0 0
      %786 = vmatpush1.bf16.msra.mxu0 0
      %787 = vmatprep.subr.bf16.mxu0 0
      %788 = vmatpush1.bf16.msra.mxu0 0
      %789 = vmatprep.subr.bf16.mxu0 0
      %790 = vmatpush1.bf16.msra.mxu0 0
      %791 = vmatprep.subr.bf16.mxu0 0
      %792 = vmatpush1.bf16.msra.mxu0 0
      %793 = vmatprep.subr.bf16.mxu0 0
      %794 = vmatpush1.bf16.msra.mxu0 0
      %795 = vmatprep.subr.bf16.mxu0 0
      %796 = vmatpush1.bf16.msra.mxu0 0
      %797 = vmatprep.subr.bf16.mxu0 0
      %798 = vmatpush1.bf16.msra.mxu0 0
      %799 = vmatprep.subr.bf16.mxu0 0
      %800 = vmatpush1.bf16.msra.mxu0 0
      %801 = vmatprep.subr.bf16.mxu0 0
      %802 = vmatpush1.bf16.msra.mxu0 0
      %803 = vmatprep.subr.bf16.mxu0 0
      %804 = vmatpush1.bf16.msra.mxu0 0
      %805 = vmatprep.subr.bf16.mxu0 0
      %806 = vmatpush1.bf16.msra.mxu0 0
      %807 = vmatprep.subr.bf16.mxu0 0
      %808 = vmatpush1.bf16.msra.mxu0 0
      %809 = vmatprep.subr.bf16.mxu0 0
      %810 = vmatpush1.bf16.msra.mxu0 0
      %811 = vmatprep.subr.bf16.mxu0 0
      %812 = vmatpush1.bf16.msra.mxu0 0
      %813 = vmatprep.mubr.bf16.mxu0 0
      %814 = vmatmul.mubr.bf16.gmra.mrb[0].mxu0 %v764
      %v815 = vpop.f32.mrb[0].mxu0
      %v816 = vadd.f32 %v720, %v815
      %v817 = vpop.f32.mrb[0].mxu0
      %v818 = vpop.f32.mrb[0].mxu0
      %v819 = vadd.f32 %v723, %v818
      %v820 = vpop.f32.mrb[0].mxu0
      %821 = vmatprep.mubr.bf16.mxu0 0
      %822 = vmatmul.mubr.bf16.gmra.mrb[0].mxu0 %v767
      %v823 = vpop.f32.mrb[0].mxu0
      %v824 = vadd.f32 %v728, %v823
      %v825 = vpop.f32.mrb[0].mxu0
      %v826 = vpop.f32.mrb[0].mxu0
      %v827 = vadd.f32 %v731, %v826
      %v828 = vpop.f32.mrb[0].mxu0
      %829 = vmatprep.mubr.bf16.mxu0 0
      %830 = vmatmul.mubr.bf16.gmra.mrb[0].mxu0 %v770
      %v831 = vpop.f32.mrb[0].mxu0
      %v832 = vadd.f32 %v736, %v831
      %v833 = vpop.f32.mrb[0].mxu0
      %v834 = vpop.f32.mrb[0].mxu0
      %v835 = vadd.f32 %v739, %v834
      %v836 = vpop.f32.mrb[0].mxu0
      %837 = vmatprep.mubr.bf16.mxu0 0
      %838 = vmatmul.mubr.bf16.gmra.mrb[0].mxu0 %v773
      %v839 = vpop.f32.mrb[0].mxu0
      %v840 = vadd.f32 %v744, %v839
      %v841 = vpop.f32.mrb[0].mxu0
      %v842 = vpop.f32.mrb[0].mxu0
      %v843 = vadd.f32 %v747, %v842
      %v844 = vpop.f32.mrb[0].mxu0
      %845 = vmatprep.mubr.bf16.mxu0 0
      %846 = vmatmul.mubr.bf16.gmra.mrb[0].mxu0 %v776
      %v847 = vpop.f32.mrb[0].mxu0
      %v848 = vadd.f32 %v752, %v847
      %v849 = vpop.f32.mrb[0].mxu0
      %v850 = vpop.f32.mrb[0].mxu0
      %v851 = vadd.f32 %v755, %v850
      %v852 = vpop.f32.mrb[0].mxu0
      %853 = vdwg.mxu0
      %v854 = vpack.c.bf16 %v645, %v644
      %s855 = scalar_lea.vmem %s1, 16
      %v856 = vld [vmem:[%s855] sm:$0xf]
      %v857 = vld [vmem:[%s855 + $0x4] sm:$0x3]
      %v860 = vunpack.c.l.b16 %v856
      %v861 = vunpack.c.l.b16 %v857
      %v862 = vpack.c.b16 %v861, %v860
      %v864 = vsel %vm666, %v854, 0
      %v867 = vsel %vm547, %v862, 0
      %869 = vmatprep.subr.bf16.mxu0 0
      %870 = vmatpush1.bf16.msra.mxu0 %v867
      %871 = vmatprep.subr.bf16.mxu0 0
      %872 = vmatpush1.bf16.msra.mxu0 0
      %873 = vmatprep.subr.bf16.mxu0 0
      %874 = vmatpush1.bf16.msra.mxu0 0
      %875 = vmatprep.subr.bf16.mxu0 0
      %876 = vmatpush1.bf16.msra.mxu0 0
      %877 = vmatprep.subr.bf16.mxu0 0
      %878 = vmatpush1.bf16.msra.mxu0 0
      %879 = vmatprep.subr.bf16.mxu0 0
      %880 = vmatpush1.bf16.msra.mxu0 0
      %881 = vmatprep.subr.bf16.mxu0 0
      %882 = vmatpush1.bf16.msra.mxu0 0
      %883 = vmatprep.subr.bf16.mxu0 0
      %884 = vmatpush1.bf16.msra.mxu0 0
      %885 = vmatprep.subr.bf16.mxu0 0
      %886 = vmatpush1.bf16.msra.mxu0 0
      %887 = vmatprep.subr.bf16.mxu0 0
      %888 = vmatpush1.bf16.msra.mxu0 0
      %889 = vmatprep.subr.bf16.mxu0 0
      %890 = vmatpush1.bf16.msra.mxu0 0
      %891 = vmatprep.subr.bf16.mxu0 0
      %892 = vmatpush1.bf16.msra.mxu0 0
      %893 = vmatprep.subr.bf16.mxu0 0
      %894 = vmatpush1.bf16.msra.mxu0 0
      %895 = vmatprep.subr.bf16.mxu0 0
      %896 = vmatpush1.bf16.msra.mxu0 0
      %897 = vmatprep.subr.bf16.mxu0 0
      %898 = vmatpush1.bf16.msra.mxu0 0
      %899 = vmatprep.subr.bf16.mxu0 0
      %900 = vmatpush1.bf16.msra.mxu0 0
      %901 = vmatprep.mubr.bf16.mxu0 0
      %902 = vmatmul.mubr.bf16.gmra.mrb[0].mxu0 %v767
      %v903 = vpop.f32.mrb[0].mxu0
      %v904 = vadd.f32 0.0, %v903
      %v905 = vpop.f32.mrb[0].mxu0
      %v906 = vpop.f32.mrb[0].mxu0
      %v907 = vadd.f32 0.0, %v906
      %v908 = vpop.f32.mrb[0].mxu0
      %909 = vmatprep.mubr.bf16.mxu0 0
      %910 = vmatmul.mubr.bf16.gmra.mrb[0].mxu0 %v770
      %v911 = vpop.f32.mrb[0].mxu0
      %v912 = vadd.f32 0.0, %v911
      %v913 = vpop.f32.mrb[0].mxu0
      %v914 = vpop.f32.mrb[0].mxu0
      %v915 = vadd.f32 0.0, %v914
      %v916 = vpop.f32.mrb[0].mxu0
      %917 = vmatprep.mubr.bf16.mxu0 0
      %918 = vmatmul.mubr.bf16.gmra.mrb[0].mxu0 %v773
      %v919 = vpop.f32.mrb[0].mxu0
      %v920 = vadd.f32 0.0, %v919
      %v921 = vpop.f32.mrb[0].mxu0
      %v922 = vpop.f32.mrb[0].mxu0
      %v923 = vadd.f32 0.0, %v922
      %v924 = vpop.f32.mrb[0].mxu0
      %925 = vmatprep.mubr.bf16.mxu0 0
      %926 = vmatmul.mubr.bf16.gmra.mrb[0].mxu0 %v776
      %v927 = vpop.f32.mrb[0].mxu0
      %v928 = vadd.f32 0.0, %v927
      %v929 = vpop.f32.mrb[0].mxu0
      %v930 = vpop.f32.mrb[0].mxu0
      %v931 = vadd.f32 0.0, %v930
      %v932 = vpop.f32.mrb[0].mxu0
      %933 = vmatprep.mubr.bf16.mxu0 0
      %934 = vmatmul.mubr.bf16.gmra.mrb[0].mxu0 %v864
      %v935 = vpop.f32.mrb[0].mxu0
      %v936 = vadd.f32 0.0, %v935
      %v937 = vpop.f32.mrb[0].mxu0
      %v938 = vpop.f32.mrb[0].mxu0
      %v939 = vadd.f32 0.0, %v938
      %v940 = vpop.f32.mrb[0].mxu0
      %941 = vdwg.mxu0
      %v942 = vadd.f32 %v816, %v904
      %v943 = vadd.f32 %v819, %v907
      %v944 = vadd.f32 %v824, %v912
      %v945 = vadd.f32 %v827, %v915
      %v946 = vadd.f32 %v832, %v920
      %v947 = vadd.f32 %v835, %v923
      %v948 = vadd.f32 %v840, %v928
      %v949 = vadd.f32 %v843, %v931
      %v950 = vadd.f32 %v848, %v936
      %v951 = vadd.f32 %v851, %v939
      %v952 = vld [vmem:[%s2] sm:$0x1]
      %v954 = vlaneseq
      %v955 = vshrl.u32 %v954, 7
      %v956 = vsub.s32 0, %v955
      %v957 = vrot.slane %v952, %v956
      %v959 = vmul.f32 %v942, %v957
      %v960 = vmul.f32 %v943, %v957
      %v961 = vmul.f32 %v944, %v957
      %v962 = vmul.f32 %v945, %v957
      %v963 = vmul.f32 %v946, %v957
      %v964 = vmul.f32 %v947, %v957
      %v965 = vmul.f32 %v948, %v957
      %v966 = vmul.f32 %v949, %v957
      %v967 = vmul.f32 %v950, %v957
      %v968 = vmul.f32 %v951, %v957
      %v969 = vld [vmem:[%s3] sm:$0x1]
      %v971 = vlaneseq
      %v972 = vshrl.u32 %v971, 7
      %v973 = vsub.s32 0, %v972
      %v974 = vrot.slane %v969, %v973
      %v976 = vadd.f32 %v959, %v974
      %v977 = vadd.f32 %v960, %v974
      %v978 = vadd.f32 %v961, %v974
      %v979 = vadd.f32 %v962, %v974
      %v980 = vadd.f32 %v963, %v974
      %v981 = vadd.f32 %v964, %v974
      %v982 = vadd.f32 %v965, %v974
      %v983 = vadd.f32 %v966, %v974
      %v984 = vadd.f32 %v967, %v974
      %v985 = vadd.f32 %v968, %v974
      %v986 = vmax.f32 %v976, 0.0
      %v987 = vmax.f32 %v977, 0.0
      %v988 = vmax.f32 %v978, 0.0
      %v989 = vmax.f32 %v979, 0.0
      %v990 = vmax.f32 %v980, 0.0
      %v991 = vmax.f32 %v981, 0.0
      %v992 = vmax.f32 %v982, 0.0
      %v993 = vmax.f32 %v983, 0.0
      %v994 = vmax.f32 %v984, 0.0
      %v995 = vmax.f32 %v985, 0.0
      %v996 = vsel 1, 0.0, %v986
      %v997 = vsel 0, 0.0, %v987
      %v998 = vsel 0, 0.0, %v988
      %v999 = vsel 0, 0.0, %v989
      %v1000 = vsel 0, 0.0, %v990
      %v1001 = vsel 0, 0.0, %v991
      %v1002 = vsel 0, 0.0, %v992
      %v1003 = vsel 0, 0.0, %v993
      %v1004 = vsel 0, 0.0, %v994
      %v1005 = vsel 1, 0.0, %v995
      %v1016 = vrot.slane %v996, 7
      %v1017 = vrot.slane %v997, 7
      %v1018 = vrot.slane %v998, 7
      %v1019 = vrot.slane %v999, 7
      %v1020 = vrot.slane %v1000, 7
      %v1021 = vrot.slane %v1001, 7
      %v1022 = vrot.slane %v1002, 7
      %v1023 = vrot.slane %v1003, 7
      %v1024 = vrot.slane %v1004, 7
      %v1025 = vrot.slane %v1005, 7
      %v1036 = vsel %vm425, 0.0, %v1016
      %v1037 = vsel %vm425, 0.0, %v1017
      %v1038 = vsel %vm425, 0.0, %v1018
      %v1039 = vsel %vm425, 0.0, %v1019
      %v1040 = vsel %vm425, 0.0, %v1020
      %v1041 = vsel %vm425, 0.0, %v1021
      %v1042 = vsel %vm425, 0.0, %v1022
      %v1043 = vsel %vm425, 0.0, %v1023
      %v1044 = vsel %vm425, 0.0, %v1024
      %v1045 = vsel %vm425, 0.0, %v1025
      %v1046 = vsel %vm425, %v1016, 0.0
      %v1047 = vsel %vm425, %v1017, 0.0
      %v1048 = vsel %vm425, %v1018, 0.0
      %v1049 = vsel %vm425, %v1019, 0.0
      %v1050 = vsel %vm425, %v1020, 0.0
      %v1051 = vsel %vm425, %v1021, 0.0
      %v1052 = vsel %vm425, %v1022, 0.0
      %v1053 = vsel %vm425, %v1023, 0.0
      %v1054 = vsel %vm425, %v1024, 0.0
      %v1055 = vsel %vm425, %v1025, 0.0
      %v1076 = vrot.slane %v1036, 1
      %v1077 = vrot.slane %v1046, 1
      %v1078 = vsel %vm474, %v1076, %v1077
      %v1079 = vrot.slane %v1037, 1
      %v1080 = vrot.slane %v1047, 1
      %v1081 = vsel %vm474, %v1079, %v1080
      %v1082 = vrot.slane %v1038, 1
      %v1083 = vrot.slane %v1048, 1
      %v1084 = vsel %vm474, %v1082, %v1083
      %v1085 = vrot.slane %v1039, 1
      %v1086 = vrot.slane %v1049, 1
      %v1087 = vsel %vm474, %v1085, %v1086
      %v1088 = vrot.slane %v1040, 1
      %v1089 = vrot.slane %v1050, 1
      %v1090 = vsel %vm474, %v1088, %v1089
      %v1091 = vrot.slane %v1041, 1
      %v1092 = vrot.slane %v1051, 1
      %v1093 = vsel %vm474, %v1091, %v1092
      %v1094 = vrot.slane %v1042, 1
      %v1095 = vrot.slane %v1052, 1
      %v1096 = vsel %vm474, %v1094, %v1095
      %v1097 = vrot.slane %v1043, 1
      %v1098 = vrot.slane %v1053, 1
      %v1099 = vsel %vm474, %v1097, %v1098
      %v1100 = vrot.slane %v1044, 1
      %v1101 = vrot.slane %v1054, 1
      %v1102 = vsel %vm474, %v1100, %v1101
      %v1103 = vrot.slane %v1045, 1
      %v1104 = vrot.slane %v1055, 1
      %v1105 = vsel %vm474, %v1103, %v1104
      %1106 = vrot.lane.b32.xlu0 %v1078, 8
      %v1107 = vpop.permute.xlu0 %1106
      %1108 = vrot.lane.b32.xlu0 %v1081, 8
      %v1109 = vpop.permute.xlu0 %1108
      %1110 = vrot.lane.b32.xlu0 %v1084, 8
      %v1111 = vpop.permute.xlu0 %1110
      %1112 = vrot.lane.b32.xlu0 %v1087, 8
      %v1113 = vpop.permute.xlu0 %1112
      %1114 = vrot.lane.b32.xlu0 %v1090, 8
      %v1115 = vpop.permute.xlu0 %1114
      %1116 = vrot.lane.b32.xlu0 %v1093, 8
      %v1117 = vpop.permute.xlu0 %1116
      %1118 = vrot.lane.b32.xlu0 %v1096, 8
      %v1119 = vpop.permute.xlu0 %1118
      %1120 = vrot.lane.b32.xlu0 %v1099, 8
      %v1121 = vpop.permute.xlu0 %1120
      %1122 = vrot.lane.b32.xlu0 %v1102, 8
      %v1123 = vpop.permute.xlu0 %1122
      %1124 = vrot.lane.b32.xlu0 %v1105, 8
      %v1125 = vpop.permute.xlu0 %1124
      %v1136 = vrot.slane %v1036, 2
      %v1137 = vrot.slane %v1046, 2
      %v1138 = vsel %vm547, %v1136, %v1137
      %v1139 = vrot.slane %v1037, 2
      %v1140 = vrot.slane %v1047, 2
      %v1141 = vsel %vm547, %v1139, %v1140
      %v1142 = vrot.slane %v1038, 2
      %v1143 = vrot.slane %v1048, 2
      %v1144 = vsel %vm547, %v1142, %v1143
      %v1145 = vrot.slane %v1039, 2
      %v1146 = vrot.slane %v1049, 2
      %v1147 = vsel %vm547, %v1145, %v1146
      %v1148 = vrot.slane %v1040, 2
      %v1149 = vrot.slane %v1050, 2
      %v1150 = vsel %vm547, %v1148, %v1149
      %v1151 = vrot.slane %v1041, 2
      %v1152 = vrot.slane %v1051, 2
      %v1153 = vsel %vm547, %v1151, %v1152
      %v1154 = vrot.slane %v1042, 2
      %v1155 = vrot.slane %v1052, 2
      %v1156 = vsel %vm547, %v1154, %v1155
      %v1157 = vrot.slane %v1043, 2
      %v1158 = vrot.slane %v1053, 2
      %v1159 = vsel %vm547, %v1157, %v1158
      %v1160 = vrot.slane %v1044, 2
      %v1161 = vrot.slane %v1054, 2
      %v1162 = vsel %vm547, %v1160, %v1161
      %v1163 = vrot.slane %v1045, 2
      %v1164 = vrot.slane %v1055, 2
      %v1165 = vsel %vm547, %v1163, %v1164
      %1166 = vrot.lane.b32.xlu0 %v1138, 16
      %v1167 = vpop.permute.xlu0 %1166
      %1168 = vrot.lane.b32.xlu0 %v1141, 16
      %v1169 = vpop.permute.xlu0 %1168
      %1170 = vrot.lane.b32.xlu0 %v1144, 16
      %v1171 = vpop.permute.xlu0 %1170
      %1172 = vrot.lane.b32.xlu0 %v1147, 16
      %v1173 = vpop.permute.xlu0 %1172
      %1174 = vrot.lane.b32.xlu0 %v1150, 16
      %v1175 = vpop.permute.xlu0 %1174
      %1176 = vrot.lane.b32.xlu0 %v1153, 16
      %v1177 = vpop.permute.xlu0 %1176
      %1178 = vrot.lane.b32.xlu0 %v1156, 16
      %v1179 = vpop.permute.xlu0 %1178
      %1180 = vrot.lane.b32.xlu0 %v1159, 16
      %v1181 = vpop.permute.xlu0 %1180
      %1182 = vrot.lane.b32.xlu0 %v1162, 16
      %v1183 = vpop.permute.xlu0 %1182
      %1184 = vrot.lane.b32.xlu0 %v1165, 16
      %v1185 = vpop.permute.xlu0 %1184
      %v1196 = vsel %vm633, %v1036, %v1107
      %v1197 = vsel %vm633, %v1037, %v1109
      %v1198 = vsel %vm633, %v1038, %v1111
      %v1199 = vsel %vm633, %v1039, %v1113
      %v1200 = vsel %vm633, %v1040, %v1115
      %v1201 = vsel %vm633, %v1041, %v1117
      %v1202 = vsel %vm633, %v1042, %v1119
      %v1203 = vsel %vm633, %v1043, %v1121
      %v1204 = vsel %vm633, %v1044, %v1123
      %v1205 = vsel %vm633, %v1045, %v1125
      %vm1206 = vcmask 130048
      %v1207 = vsel %vm1206, %v1196, %v1167
      %v1208 = vsel %vm1206, %v1197, %v1169
      %v1209 = vsel %vm1206, %v1198, %v1171
      %v1210 = vsel %vm1206, %v1199, %v1173
      %v1211 = vsel %vm1206, %v1200, %v1175
      %v1212 = vsel %vm1206, %v1201, %v1177
      %v1213 = vsel %vm1206, %v1202, %v1179
      %v1214 = vsel %vm1206, %v1203, %v1181
      %v1215 = vsel %vm1206, %v1204, %v1183
      %v1216 = vsel %vm1206, %v1205, %v1185
      %v1217 = vpack.c.bf16 %v1208, %v1207
      %v1218 = vpack.c.bf16 %v1210, %v1209
      %v1219 = vpack.c.bf16 %v1212, %v1211
      %v1220 = vpack.c.bf16 %v1214, %v1213
      %v1221 = vld [vmem:[%s4] sm:$0xf]
      %v1222 = vld [vmem:[%s4 + $0x4] sm:$0xf]
      %v1223 = vld [vmem:[%s4 + $0x8] sm:$0xf]
      %v1224 = vpack.c.bf16 %v1209, %v1208
      %v1225 = vpack.c.bf16 %v1211, %v1210
      %v1226 = vpack.c.bf16 %v1213, %v1212
      %v1227 = vpack.c.bf16 %v1215, %v1214
      %s1228 = scalar_lea.vmem %s4, 12
      %v1229 = vld [vmem:[%s1228] sm:$0xf]
      %v1230 = vld [vmem:[%s1228 + $0x4] sm:$0xf]
      %v1231 = vld [vmem:[%s1228 + $0x8] sm:$0xf]
      %v1235 = vunpack.c.l.b16 %v1229
      %v1236 = vunpack.c.l.b16 %v1230
      %v1237 = vunpack.c.l.b16 %v1231
      %v1238 = vpack.c.b16 %v1236, %v1235
      %v1239 = vpack.c.b16 %v1237, %v1237
      %vm1241 = vcmask 195584
      %v1243 = vsel %vm1241, %v1224, 0
      %v1246 = vsel %vm1241, %v1225, 0
      %v1249 = vsel %vm1241, %v1226, 0
      %v1252 = vsel %vm1241, %v1227, 0
      %vm1254 = vcmask 1043456
      %v1256 = vsel %vm1254, %v1239, 0
      %1258 = vmatprep.subr.bf16.mxu0 0
      %1259 = vmatpush1.bf16.msra.mxu0 %v1238
      %1260 = vmatprep.subr.bf16.mxu0 0
      %1261 = vmatpush1.bf16.msra.mxu0 %v1256
      %1262 = vmatprep.subr.bf16.mxu0 0
      %1263 = vmatpush1.bf16.msra.mxu0 0
      %1264 = vmatprep.subr.bf16.mxu0 0
      %1265 = vmatpush1.bf16.msra.mxu0 0
      %1266 = vmatprep.subr.bf16.mxu0 0
      %1267 = vmatpush1.bf16.msra.mxu0 0
      %1268 = vmatprep.subr.bf16.mxu0 0
      %1269 = vmatpush1.bf16.msra.mxu0 0
      %1270 = vmatprep.subr.bf16.mxu0 0
      %1271 = vmatpush1.bf16.msra.mxu0 0
      %1272 = vmatprep.subr.bf16.mxu0 0
      %1273 = vmatpush1.bf16.msra.mxu0 0
      %1274 = vmatprep.subr.bf16.mxu0 0
      %1275 = vmatpush1.bf16.msra.mxu0 0
      %1276 = vmatprep.subr.bf16.mxu0 0
      %1277 = vmatpush1.bf16.msra.mxu0 0
      %1278 = vmatprep.subr.bf16.mxu0 0
      %1279 = vmatpush1.bf16.msra.mxu0 0
      %1280 = vmatprep.subr.bf16.mxu0 0
      %1281 = vmatpush1.bf16.msra.mxu0 0
      %1282 = vmatprep.subr.bf16.mxu0 0
      %1283 = vmatpush1.bf16.msra.mxu0 0
      %1284 = vmatprep.subr.bf16.mxu0 0
      %1285 = vmatpush1.bf16.msra.mxu0 0
      %1286 = vmatprep.subr.bf16.mxu0 0
      %1287 = vmatpush1.bf16.msra.mxu0 0
      %1288 = vmatprep.subr.bf16.mxu0 0
      %1289 = vmatpush1.bf16.msra.mxu0 0
      %1290 = vmatprep.mubr.bf16.mxu0 0
      %1291 = vmatmul.mubr.bf16.gmra.mrb[0].mxu0 %v1243
      %v1292 = vpop.f32.mrb[0].mxu0
      %v1293 = vadd.f32 0.0, %v1292
      %v1294 = vpop.f32.mrb[0].mxu0
      %v1295 = vpop.f32.mrb[0].mxu0
      %v1296 = vadd.f32 0.0, %v1295
      %v1297 = vpop.f32.mrb[0].mxu0
      %1298 = vmatprep.mubr.bf16.mxu0 0
      %1299 = vmatmul.mubr.bf16.gmra.mrb[0].mxu0 %v1246
      %v1300 = vpop.f32.mrb[0].mxu0
      %v1301 = vadd.f32 0.0, %v1300
      %v1302 = vpop.f32.mrb[0].mxu0
      %v1303 = vpop.f32.mrb[0].mxu0
      %v1304 = vadd.f32 0.0, %v1303
      %v1305 = vpop.f32.mrb[0].mxu0
      %1306 = vmatprep.mubr.bf16.mxu0 0
      %1307 = vmatmul.mubr.bf16.gmra.mrb[0].mxu0 %v1249
      %v1308 = vpop.f32.mrb[0].mxu0
      %v1309 = vadd.f32 0.0, %v1308
      %v1310 = vpop.f32.mrb[0].mxu0
      %v1311 = vpop.f32.mrb[0].mxu0
      %v1312 = vadd.f32 0.0, %v1311
      %v1313 = vpop.f32.mrb[0].mxu0
      %1314 = vmatprep.mubr.bf16.mxu0 0
      %1315 = vmatmul.mubr.bf16.gmra.mrb[0].mxu0 %v1252
      %v1316 = vpop.f32.mrb[0].mxu0
      %v1317 = vadd.f32 0.0, %v1316
      %v1318 = vpop.f32.mrb[0].mxu0
      %v1319 = vpop.f32.mrb[0].mxu0
      %v1320 = vadd.f32 0.0, %v1319
      %v1321 = vpop.f32.mrb[0].mxu0
      %1322 = vdwg.mxu0
      %v1326 = vunpack.c.l.b16 %v1221
      %v1327 = vunpack.c.l.b16 %v1222
      %v1328 = vunpack.c.l.b16 %v1223
      %v1329 = vpack.c.b16 %v1327, %v1326
      %v1330 = vpack.c.b16 %v1328, %v1328
      %v1333 = vsel %vm1241, %v1217, 0
      %v1336 = vsel %vm1241, %v1218, 0
      %v1339 = vsel %vm1241, %v1219, 0
      %v1342 = vsel %vm1241, %v1220, 0
      %v1345 = vsel %vm1254, %v1330, 0
      %1347 = vmatprep.subr.bf16.mxu0 0
      %1348 = vmatpush1.bf16.msra.mxu0 %v1329
      %1349 = vmatprep.subr.bf16.mxu0 0
      %1350 = vmatpush1.bf16.msra.mxu0 %v1345
      %1351 = vmatprep.subr.bf16.mxu0 0
      %1352 = vmatpush1.bf16.msra.mxu0 0
      %1353 = vmatprep.subr.bf16.mxu0 0
      %1354 = vmatpush1.bf16.msra.mxu0 0
      %1355 = vmatprep.subr.bf16.mxu0 0
      %1356 = vmatpush1.bf16.msra.mxu0 0
      %1357 = vmatprep.subr.bf16.mxu0 0
      %1358 = vmatpush1.bf16.msra.mxu0 0
      %1359 = vmatprep.subr.bf16.mxu0 0
      %1360 = vmatpush1.bf16.msra.mxu0 0
      %1361 = vmatprep.subr.bf16.mxu0 0
      %1362 = vmatpush1.bf16.msra.mxu0 0
      %1363 = vmatprep.subr.bf16.mxu0 0
      %1364 = vmatpush1.bf16.msra.mxu0 0
      %1365 = vmatprep.subr.bf16.mxu0 0
      %1366 = vmatpush1.bf16.msra.mxu0 0
      %1367 = vmatprep.subr.bf16.mxu0 0
      %1368 = vmatpush1.bf16.msra.mxu0 0
      %1369 = vmatprep.subr.bf16.mxu0 0
      %1370 = vmatpush1.bf16.msra.mxu0 0
      %1371 = vmatprep.subr.bf16.mxu0 0
      %1372 = vmatpush1.bf16.msra.mxu0 0
      %1373 = vmatprep.subr.bf16.mxu0 0
      %1374 = vmatpush1.bf16.msra.mxu0 0
      %1375 = vmatprep.subr.bf16.mxu0 0
      %1376 = vmatpush1.bf16.msra.mxu0 0
      %1377 = vmatprep.subr.bf16.mxu0 0
      %1378 = vmatpush1.bf16.msra.mxu0 0
      %1379 = vmatprep.mubr.bf16.mxu0 0
      %1380 = vmatmul.mubr.bf16.gmra.mrb[0].mxu0 %v1333
      %v1381 = vpop.f32.mrb[0].mxu0
      %v1382 = vadd.f32 %v1293, %v1381
      %v1383 = vpop.f32.mrb[0].mxu0
      %v1384 = vpop.f32.mrb[0].mxu0
      %v1385 = vadd.f32 %v1296, %v1384
      %v1386 = vpop.f32.mrb[0].mxu0
      %1387 = vmatprep.mubr.bf16.mxu0 0
      %1388 = vmatmul.mubr.bf16.gmra.mrb[0].mxu0 %v1336
      %v1389 = vpop.f32.mrb[0].mxu0
      %v1390 = vadd.f32 %v1301, %v1389
      %v1391 = vpop.f32.mrb[0].mxu0
      %v1392 = vpop.f32.mrb[0].mxu0
      %v1393 = vadd.f32 %v1304, %v1392
      %v1394 = vpop.f32.mrb[0].mxu0
      %1395 = vmatprep.mubr.bf16.mxu0 0
      %1396 = vmatmul.mubr.bf16.gmra.mrb[0].mxu0 %v1339
      %v1397 = vpop.f32.mrb[0].mxu0
      %v1398 = vadd.f32 %v1309, %v1397
      %v1399 = vpop.f32.mrb[0].mxu0
      %v1400 = vpop.f32.mrb[0].mxu0
      %v1401 = vadd.f32 %v1312, %v1400
      %v1402 = vpop.f32.mrb[0].mxu0
      %1403 = vmatprep.mubr.bf16.mxu0 0
      %1404 = vmatmul.mubr.bf16.gmra.mrb[0].mxu0 %v1342
      %v1405 = vpop.f32.mrb[0].mxu0
      %v1406 = vadd.f32 %v1317, %v1405
      %v1407 = vpop.f32.mrb[0].mxu0
      %v1408 = vpop.f32.mrb[0].mxu0
      %v1409 = vadd.f32 %v1320, %v1408
      %v1410 = vpop.f32.mrb[0].mxu0
      %1411 = vdwg.mxu0
      %v1412 = vpack.c.bf16 %v1216, %v1215
      %s1413 = scalar_lea.vmem %s4, 24
      %v1414 = vld [vmem:[%s1413] sm:$0xf]
      %v1415 = vld [vmem:[%s1413 + $0x4] sm:$0xf]
      %v1416 = vld [vmem:[%s1413 + $0x8] sm:$0xf]
      %v1420 = vunpack.c.l.b16 %v1414
      %v1421 = vunpack.c.l.b16 %v1415
      %v1422 = vunpack.c.l.b16 %v1416
      %v1423 = vpack.c.b16 %v1421, %v1420
      %v1424 = vpack.c.b16 %v1422, %v1422
      %v1427 = vsel %vm1241, %v1412, 0
      %v1430 = vsel %vm1254, %v1424, 0
      %1432 = vmatprep.subr.bf16.mxu0 0
      %1433 = vmatpush1.bf16.msra.mxu0 %v1423
      %1434 = vmatprep.subr.bf16.mxu0 0
      %1435 = vmatpush1.bf16.msra.mxu0 %v1430
      %1436 = vmatprep.subr.bf16.mxu0 0
      %1437 = vmatpush1.bf16.msra.mxu0 0
      %1438 = vmatprep.subr.bf16.mxu0 0
      %1439 = vmatpush1.bf16.msra.mxu0 0
      %1440 = vmatprep.subr.bf16.mxu0 0
      %1441 = vmatpush1.bf16.msra.mxu0 0
      %1442 = vmatprep.subr.bf16.mxu0 0
      %1443 = vmatpush1.bf16.msra.mxu0 0
      %1444 = vmatprep.subr.bf16.mxu0 0
      %1445 = vmatpush1.bf16.msra.mxu0 0
      %1446 = vmatprep.subr.bf16.mxu0 0
      %1447 = vmatpush1.bf16.msra.mxu0 0
      %1448 = vmatprep.subr.bf16.mxu0 0
      %1449 = vmatpush1.bf16.msra.mxu0 0
      %1450 = vmatprep.subr.bf16.mxu0 0
      %1451 = vmatpush1.bf16.msra.mxu0 0
      %1452 = vmatprep.subr.bf16.mxu0 0
      %1453 = vmatpush1.bf16.msra.mxu0 0
      %1454 = vmatprep.subr.bf16.mxu0 0
      %1455 = vmatpush1.bf16.msra.mxu0 0
      %1456 = vmatprep.subr.bf16.mxu0 0
      %1457 = vmatpush1.bf16.msra.mxu0 0
      %1458 = vmatprep.subr.bf16.mxu0 0
      %1459 = vmatpush1.bf16.msra.mxu0 0
      %1460 = vmatprep.subr.bf16.mxu0 0
      %1461 = vmatpush1.bf16.msra.mxu0 0
      %1462 = vmatprep.subr.bf16.mxu0 0
      %1463 = vmatpush1.bf16.msra.mxu0 0
      %1464 = vmatprep.mubr.bf16.mxu0 0
      %1465 = vmatmul.mubr.bf16.gmra.mrb[0].mxu0 %v1336
      %v1466 = vpop.f32.mrb[0].mxu0
      %v1467 = vadd.f32 0.0, %v1466
      %v1468 = vpop.f32.mrb[0].mxu0
      %v1469 = vpop.f32.mrb[0].mxu0
      %v1470 = vadd.f32 0.0, %v1469
      %v1471 = vpop.f32.mrb[0].mxu0
      %1472 = vmatprep.mubr.bf16.mxu0 0
      %1473 = vmatmul.mubr.bf16.gmra.mrb[0].mxu0 %v1339
      %v1474 = vpop.f32.mrb[0].mxu0
      %v1475 = vadd.f32 0.0, %v1474
      %v1476 = vpop.f32.mrb[0].mxu0
      %v1477 = vpop.f32.mrb[0].mxu0
      %v1478 = vadd.f32 0.0, %v1477
      %v1479 = vpop.f32.mrb[0].mxu0
      %1480 = vmatprep.mubr.bf16.mxu0 0
      %1481 = vmatmul.mubr.bf16.gmra.mrb[0].mxu0 %v1342
      %v1482 = vpop.f32.mrb[0].mxu0
      %v1483 = vadd.f32 0.0, %v1482
      %v1484 = vpop.f32.mrb[0].mxu0
      %v1485 = vpop.f32.mrb[0].mxu0
      %v1486 = vadd.f32 0.0, %v1485
      %v1487 = vpop.f32.mrb[0].mxu0
      %1488 = vmatprep.mubr.bf16.mxu0 0
      %1489 = vmatmul.mubr.bf16.gmra.mrb[0].mxu0 %v1427
      %v1490 = vpop.f32.mrb[0].mxu0
      %v1491 = vadd.f32 0.0, %v1490
      %v1492 = vpop.f32.mrb[0].mxu0
      %v1493 = vpop.f32.mrb[0].mxu0
      %v1494 = vadd.f32 0.0, %v1493
      %v1495 = vpop.f32.mrb[0].mxu0
      %1496 = vdwg.mxu0
      %v1497 = vadd.f32 %v1382, %v1467
      %v1498 = vadd.f32 %v1385, %v1470
      %v1499 = vadd.f32 %v1390, %v1475
      %v1500 = vadd.f32 %v1393, %v1478
      %v1501 = vadd.f32 %v1398, %v1483
      %v1502 = vadd.f32 %v1401, %v1486
      %v1503 = vadd.f32 %v1406, %v1491
      %v1504 = vadd.f32 %v1409, %v1494
      %v1505 = vld [vmem:[%s5] sm:$0x1]
      %v1507 = vlaneseq
      %v1508 = vshrl.u32 %v1507, 7
      %v1509 = vsub.s32 0, %v1508
      %v1510 = vrot.slane %v1505, %v1509
      %v1512 = vmul.f32 %v1497, %v1510
      %v1513 = vmul.f32 %v1498, %v1510
      %v1514 = vmul.f32 %v1499, %v1510
      %v1515 = vmul.f32 %v1500, %v1510
      %v1516 = vmul.f32 %v1501, %v1510
      %v1517 = vmul.f32 %v1502, %v1510
      %v1518 = vmul.f32 %v1503, %v1510
      %v1519 = vmul.f32 %v1504, %v1510
      %v1520 = vld [vmem:[%s6] sm:$0x1]
      %v1522 = vlaneseq
      %v1523 = vshrl.u32 %v1522, 7
      %v1524 = vsub.s32 0, %v1523
      %v1525 = vrot.slane %v1520, %v1524
      %v1527 = vadd.f32 %v1512, %v1525
      %v1528 = vadd.f32 %v1513, %v1525
      %v1529 = vadd.f32 %v1514, %v1525
      %v1530 = vadd.f32 %v1515, %v1525
      %v1531 = vadd.f32 %v1516, %v1525
      %v1532 = vadd.f32 %v1517, %v1525
      %v1533 = vadd.f32 %v1518, %v1525
      %v1534 = vadd.f32 %v1519, %v1525
      %v1535 = vmax.f32 %v1527, 0.0
      %v1536 = vmax.f32 %v1528, 0.0
      %v1537 = vmax.f32 %v1529, 0.0
      %v1538 = vmax.f32 %v1530, 0.0
      %v1539 = vmax.f32 %v1531, 0.0
      %v1540 = vmax.f32 %v1532, 0.0
      %v1541 = vmax.f32 %v1533, 0.0
      %v1542 = vmax.f32 %v1534, 0.0
      %1543 = vst.msk [vmem:[%s278] sm:$0xff] %vm633, %v1535
      %1544 = vst.msk [vmem:[%s278 + $0x8] sm:$0xff] %vm633, %v1536
      %1545 = vst.msk [vmem:[%s278 + $0x10] sm:$0xff] %vm633, %v1537
      %1546 = vst.msk [vmem:[%s278 + $0x18] sm:$0xff] %vm633, %v1538
      %1547 = vst.msk [vmem:[%s278 + $0x20] sm:$0xff] %vm633, %v1539
      %1548 = vst.msk [vmem:[%s278 + $0x28] sm:$0xff] %vm633, %v1540
      %1549 = vst.msk [vmem:[%s278 + $0x30] sm:$0xff] %vm633, %v1541
      %1550 = vst.msk [vmem:[%s278 + $0x38] sm:$0xff] %vm633, %v1542
      %p1551 = scmp.lt.s32.totalorder %s18, 1
      %s1552 = scalar_select %p1551, %s18, 1
      %s1553 = smul.addr %s1552, 8
      %s1554 = smul.addr %s1553, 8
      %s1555 = scalar_lea.vmem %s7, %s1554
      // Predicated region
      $region49: #{tpu_custom_call.1} parent=47 // pred_check
        %p1556 = pneg %p188
      $region50: #{tpu_custom_call.1} parent=47 // pred_check_branch
        %1558 = sbr.rel (%p1556) target = $region52
      $region51: #{tpu_custom_call.1} parent=47 // pred_region
        _
      $region52: #{tpu_custom_call.1} parent=47 // pred_fallthru
        _
    $region48: #{tpu_custom_call.1} parent=5 // pred_fallthru
      _
    %p1559 = scmp.le.s32.totalorder 2, %s13
    // Predicated region
    $region53: #{tpu_custom_call.1} parent=5 // pred_check
      %p1560 = pneg %p1559
    $region54: #{tpu_custom_call.1} parent=5 // pred_check_branch
      %1562 = sbr.rel (%p1560) target = $region56
    $region55: #{tpu_custom_call.1} parent=5 // pred_region
      %s1563 = ssub.s32 %s13, 2
      // Predicated region
      $region57: #{tpu_custom_call.1} parent=55 // pred_check
        %p1564 = pneg %p194
      $region58: #{tpu_custom_call.1} parent=55 // pred_check_branch
        %1566 = sbr.rel (%p1564) target = $region60
      $region59: #{tpu_custom_call.1} parent=55 // pred_region
        %p1567 = scmp.lt.s32.totalorder %s19, 1
        %s1568 = scalar_select %p1567, %s19, 1
        %s1569 = smul.addr %s1568, 8
        %s1570 = smul.addr %s1569, 8
        %s1571 = scalar_lea.vmem %s7, %s1570
      $region60: #{tpu_custom_call.1} parent=55 // pred_fallthru
        _
    $region56: #{tpu_custom_call.1} parent=5 // pred_fallthru
      _
  $region6: #{tpu_custom_call.1} parent=0 // loop_footer
    %s17 = sadd.s32 1, %s13
  $region7: #{tpu_custom_call.1} parent=0 // loop_footer_branch
    %12 = sbr.rel target = $region3
  $region8: #{tpu_custom_call.1} parent=0 // loop_exit
    _

</llo_original>
